<compile_context>
chip_gen: v5e
topology: v5e:2x2
jax: 0.10.0
libtpu: 0.0.40
codegen_flags: <defaults>
</compile_context>

<pallas_src>
import jax
import jax.numpy as jnp
from jax.experimental import pallas as pl
from jax.experimental.pallas import tpu as pltpu

# ---- sizes -------------------------------------------------------------------
B = 16           # graphs per call
N = 32           # nodes per graph
E = 96           # edges per graph (as generated)
EP = 128         # edges per graph after zero-weight padding (lane-dense)
G = 4            # graphs packed per grid step  -> G*N = 128 node rows
GN = G * N       # 128
GE = G * EP      # 512
D_IN = 16        # feat_dim
D_HID = 32       # hidden_dim  (GAE default)
D_EMB = 16       # embed_dim   (GAE default)


def _xavier_uniform(key, shape):
    """nn.init glorot for a Linear weight of shape (out, in)."""
    fan_out, fan_in = shape
    limit = (6.0 / (fan_in + fan_out)) ** 0.5
    return jax.random.uniform(key, shape, jnp.float32, -limit, limit)


# ---- Pallas kernel -----------------------------------------------------------
def gae_kernel(dst_ref, src_ref, ew_ref, x_ref,
               w1_ref, b1_ref, w2_ref, b2_ref, out_ref):
    dst = dst_ref[0]                   # (1, GE) int32  target node of each edge
    src = src_ref[0]                   # (1, GE) int32  source node of each edge
    ew = ew_ref[0]                     # (1, GE) f32    (0 for padded edges)
    x = x_ref[0]                       # (GN, D_IN)

    # One-hot edge masks from a single shared iota (VPU only, no scatter).
    rows = jax.lax.broadcasted_iota(jnp.int32, (GN, GE), 0)
    dst_oh = (rows == dst).astype(jnp.float32)            # (GN, GE): [i == dst[e]]
    src_oh = (rows == src).astype(jnp.float32)            # (GN, GE): [j == src[e]]

    # adj[i, j] = sum_e ew[e]*[dst[e]==i]*[src[e]==j]   (block-diagonal across
    # the G packed graphs by construction), plus self loops of weight 1.
    adj = jax.lax.dot_general(dst_oh * ew, src_oh,
                              (((1,), (1,)), ((), ())),
                              preferred_element_type=jnp.float32)   # (GN, GN)
    eye = (jax.lax.broadcasted_iota(jnp.int32, (GN, GN), 0)
           == jax.lax.broadcasted_iota(jnp.int32, (GN, GN), 1)).astype(jnp.float32)
    adj = adj + eye

    # GCN symmetric normalization.  deg[i] = sum_j adj[i, j] >= 1 (self loops),
    # so no zero-degree guard.  Row form of deg comes from the MXU (no transpose).
    deg_col = jnp.sum(adj, axis=1, keepdims=True)                       # (GN, 1)
    deg_row = jax.lax.dot_general(jnp.ones((1, GN), jnp.float32), adj,
                                  (((1,), (1,)), ((), ())),
                                  preferred_element_type=jnp.float32)   # (1, GN)
    adj_n = (jax.lax.rsqrt(deg_col) * adj) * jax.lax.rsqrt(deg_row)     # (GN, GN)

    # layer 1: GCNConv(feat -> hidden) -> ReLU  (Dropout == identity at eval)
    h = jnp.dot(x, w1_ref[...], preferred_element_type=jnp.float32)     # X @ W1
    h = jnp.dot(adj_n, h, preferred_element_type=jnp.float32) + b1_ref[...]
    h = jnp.maximum(h, 0.0)

    # layer 2: GCNConv(hidden -> embed)
    z = jnp.dot(h, w2_ref[...], preferred_element_type=jnp.float32)     # H @ W2
    z = jnp.dot(adj_n, z, preferred_element_type=jnp.float32) + b2_ref[...]

    out_ref[0] = z


# ---- wrapper -----------------------------------------------------------------
def gae_forward(x, ei, ew, params):
    """x: (B, N, D_IN) f32; ei: (B, 2, E) int32 [src; dst]; ew: (B, E) f32 or None."""
    nb, n, d_in = x.shape
    e = ei.shape[2]
    assert n == N and d_in == D_IN and e <= EP
    if ew is None:
        ew = jnp.ones((nb, e), jnp.float32)

    src = ei[:, 0, :].astype(jnp.int32)
    dst = ei[:, 1, :].astype(jnp.int32)
    ew = ew.astype(jnp.float32)
    x = x.astype(jnp.float32)

    # Pad edges to EP per graph (dummy edges: src=dst=0, weight exactly 0).
    if e < EP:
        pad = ((0, 0), (0, EP - e))
        src = jnp.pad(src, pad)
        dst = jnp.pad(dst, pad)
        ew = jnp.pad(ew, pad)

    # Pad the batch to a multiple of G (padded graphs: zero features/weights).
    nbp = ((nb + G - 1) // G) * G
    if nbp != nb:
        x = jnp.pad(x, ((0, nbp - nb), (0, 0), (0, 0)))
        src = jnp.pad(src, ((0, nbp - nb), (0, 0)))
        dst = jnp.pad(dst, ((0, nbp - nb), (0, 0)))
        ew = jnp.pad(ew, ((0, nbp - nb), (0, 0)))
    steps = nbp // G

    # Offset node ids by the graph's slot inside its pack -> block-diagonal adj.
    off = (jnp.arange(nbp, dtype=jnp.int32) % G)[:, None] * N          # (nbp, 1)
    src_p = (src + off).reshape(steps, 1, GE)
    dst_p = (dst + off).reshape(steps, 1, GE)
    ew_p = ew.reshape(steps, 1, GE)
    x_p = x.reshape(steps, GN, D_IN)

    grid_spec = pltpu.PrefetchScalarGridSpec(
        num_scalar_prefetch=0,
        grid=(steps,),
        in_specs=[
            pl.BlockSpec((1, 1, GE), lambda s: (s, 0, 0)),        # dst (lane-major)
            pl.BlockSpec((1, 1, GE), lambda s: (s, 0, 0)),        # src (lane-major)
            pl.BlockSpec((1, 1, GE), lambda s: (s, 0, 0)),        # edge_weight
            pl.BlockSpec((1, GN, D_IN), lambda s: (s, 0, 0)),     # packed features
            pl.BlockSpec((D_IN, D_HID), lambda s: (0, 0)),        # W1^T (shared)
            pl.BlockSpec((1, D_HID), lambda s: (0, 0)),           # b1
            pl.BlockSpec((D_HID, D_EMB), lambda s: (0, 0)),       # W2^T (shared)
            pl.BlockSpec((1, D_EMB), lambda s: (0, 0)),           # b2
        ],
        out_specs=pl.BlockSpec((1, GN, D_EMB), lambda s: (s, 0, 0)),
    )
    out = pl.pallas_call(
        gae_kernel,
        out_shape=jax.ShapeDtypeStruct((steps, GN, D_EMB), jnp.float32),
        grid_spec=grid_spec,
        compiler_params=pltpu.CompilerParams(
            dimension_semantics=("parallel",)),     # megacore sharding on v7x
    )(dst_p, src_p, ew_p, x_p,
      params["w1_t"], params["b1"], params["w2_t"], params["b2"])

    return out.reshape(nbp, N, D_EMB)[:nb]


def init_params(key):
    k1, k2 = jax.random.split(key)
    w1 = _xavier_uniform(k1, (D_HID, D_IN))      # GCNConv.lin weight (out, in)
    w2 = _xavier_uniform(k2, (D_EMB, D_HID))
    return {
        "w1_t": w1.T,                                     # (D_IN, D_HID)
        "b1": jnp.zeros((1, D_HID), jnp.float32),
        "w2_t": w2.T,                                     # (D_HID, D_EMB)
        "b2": jnp.zeros((1, D_EMB), jnp.float32),
    }


if __name__ == "__main__":
    key = jax.random.PRNGKey(0)
    k_x, k_src, k_off, k_ew, k_p = jax.random.split(key, 5)

    x = jax.random.normal(k_x, (B, N, D_IN), jnp.float32)
    # self-loop-free random edges (dst = src + nonzero offset mod N)
    src_idx = jax.random.randint(k_src, (B, E), 0, N, jnp.int32)
    off = jax.random.randint(k_off, (B, E), 1, N, jnp.int32)
    dst_idx = (src_idx + off) % N
    ei = jnp.stack([src_idx, dst_idx], axis=1)            # (B, 2, E)
    ew = jax.random.uniform(k_ew, (B, E), jnp.float32)

    params = init_params(k_p)

    out = jax.jit(gae_forward)(x, ei, ew, params)
    jax.block_until_ready(out)
    assert out.shape == (B, N, D_EMB)
    assert bool(jnp.all(jnp.isfinite(out)))
    print("KERNEL_OK")
</pallas_src>

<mosaic_0001>
module attributes {stable_mosaic.version = 11 : i64} {
  func.func @gae_kernel(%arg0: i32, %arg1: memref<1x1x512xi32, #tpu.memory_space<vmem>>, %arg2: memref<1x1x512xi32, #tpu.memory_space<vmem>>, %arg3: memref<1x1x512xf32, #tpu.memory_space<vmem>>, %arg4: memref<1x128x16xf32, #tpu.memory_space<vmem>>, %arg5: memref<16x32xf32, #tpu.memory_space<vmem>>, %arg6: memref<1x32xf32, #tpu.memory_space<vmem>>, %arg7: memref<32x16xf32, #tpu.memory_space<vmem>>, %arg8: memref<1x16xf32, #tpu.memory_space<vmem>>, %arg9: memref<1x128x16xf32, #tpu.memory_space<vmem>>) attributes {dimension_semantics = [#tpu.dimension_semantics<parallel>], iteration_bounds = array<i64: 4>, scalar_prefetch = 0 : i64, scratch_operands = 0 : i64, tpu.core_type = #tpu.core_type<tc>, window_params = [{transform_indices = @transform_0, window_bounds = array<i64: 1, 1, 512>}, {transform_indices = @transform_1, window_bounds = array<i64: 1, 1, 512>}, {transform_indices = @transform_2, window_bounds = array<i64: 1, 1, 512>}, {transform_indices = @transform_3, window_bounds = array<i64: 1, 128, 16>}, {pipeline_mode = #tpu.pipeline_mode<synchronous>, transform_indices = @transform_4, window_bounds = array<i64: 16, 32>}, {pipeline_mode = #tpu.pipeline_mode<synchronous>, transform_indices = @transform_5, window_bounds = array<i64: 1, 32>}, {pipeline_mode = #tpu.pipeline_mode<synchronous>, transform_indices = @transform_6, window_bounds = array<i64: 32, 16>}, {pipeline_mode = #tpu.pipeline_mode<synchronous>, transform_indices = @transform_7, window_bounds = array<i64: 1, 16>}, {transform_indices = @transform_8, window_bounds = array<i64: 1, 128, 16>}]} {
    %c0 = arith.constant 0 : index
    %c0_0 = arith.constant 0 : index
    %c0_1 = arith.constant 0 : index
    %0 = vector.load %arg1[%c0, %c0_0, %c0_1] : memref<1x1x512xi32, #tpu.memory_space<vmem>>, vector<1x1x512xi32>
    %1 = vector.shape_cast %0 : vector<1x1x512xi32> to vector<1x512xi32>
    %c0_2 = arith.constant 0 : index
    %c0_3 = arith.constant 0 : index
    %c0_4 = arith.constant 0 : index
    %2 = vector.load %arg2[%c0_2, %c0_3, %c0_4] : memref<1x1x512xi32, #tpu.memory_space<vmem>>, vector<1x1x512xi32>
    %3 = vector.shape_cast %2 : vector<1x1x512xi32> to vector<1x512xi32>
    %c0_5 = arith.constant 0 : index
    %c0_6 = arith.constant 0 : index
    %c0_7 = arith.constant 0 : index
    %4 = vector.load %arg3[%c0_5, %c0_6, %c0_7] : memref<1x1x512xf32, #tpu.memory_space<vmem>>, vector<1x1x512xf32>
    %5 = vector.shape_cast %4 : vector<1x1x512xf32> to vector<1x512xf32>
    %c0_8 = arith.constant 0 : index
    %c0_9 = arith.constant 0 : index
    %c0_10 = arith.constant 0 : index
    %6 = vector.load %arg4[%c0_8, %c0_9, %c0_10] : memref<1x128x16xf32, #tpu.memory_space<vmem>>, vector<1x128x16xf32>
    %7 = vector.shape_cast %6 : vector<1x128x16xf32> to vector<128x16xf32>
    %8 = tpu.iota {dimensions = array<i32: 0>} : vector<128x512xi32>
    %9 = vector.broadcast %1 : vector<1x512xi32> to vector<128x512xi32>
    %10 = arith.cmpi eq, %8, %9 : vector<128x512xi32>
    %11 = arith.extui %10 : vector<128x512xi1> to vector<128x512xi32>
    %12 = arith.sitofp %11 : vector<128x512xi32> to vector<128x512xf32>
    %13 = vector.broadcast %3 : vector<1x512xi32> to vector<128x512xi32>
    %14 = arith.cmpi eq, %8, %13 : vector<128x512xi32>
    %15 = arith.extui %14 : vector<128x512xi1> to vector<128x512xi32>
    %16 = arith.sitofp %15 : vector<128x512xi32> to vector<128x512xf32>
    %17 = vector.broadcast %5 : vector<1x512xf32> to vector<128x512xf32>
    %18 = arith.mulf %12, %17 : vector<128x512xf32>
    %cst = arith.constant dense<0.000000e+00> : vector<128x128xf32>
    %19 = tpu.matmul %18, %16, %cst {dimension_numbers = #tpu.dot_dimension_numbers<[1], [1], [0], [0], [0, 0, 1, 0], [], []>} : vector<128x512xf32>, vector<128x512xf32>, vector<128x128xf32> -> vector<128x128xf32>
    %20 = tpu.iota {dimensions = array<i32: 0>} : vector<128x128xi32>
    %21 = tpu.iota {dimensions = array<i32: 1>} : vector<128x128xi32>
    %22 = arith.cmpi eq, %20, %21 : vector<128x128xi32>
    %23 = arith.extui %22 : vector<128x128xi1> to vector<128x128xi32>
    %24 = arith.sitofp %23 : vector<128x128xi32> to vector<128x128xf32>
    %25 = arith.addf %19, %24 : vector<128x128xf32>
    %cst_11 = arith.constant dense<0.000000e+00> : vector<128xf32>
    %26 = vector.multi_reduction <add>, %25, %cst_11 [1] : vector<128x128xf32> to vector<128xf32>
    %27 = vector.shape_cast %26 : vector<128xf32> to vector<128x1xf32>
    %cst_12 = arith.constant 1.000000e+00 : f32
    %28 = vector.broadcast %cst_12 : f32 to vector<1x128xf32>
    %cst_13 = arith.constant dense<0.000000e+00> : vector<1x128xf32>
    %29 = tpu.matmul %28, %25, %cst_13 {dimension_numbers = #tpu.dot_dimension_numbers<[1], [1], [0], [0], [0, 0, 1, 0], [], []>} : vector<1x128xf32>, vector<128x128xf32>, vector<1x128xf32> -> vector<1x128xf32>
    %30 = math.rsqrt %27 : vector<128x1xf32>
    %31 = vector.broadcast %30 : vector<128x1xf32> to vector<128x128xf32>
    %32 = arith.mulf %31, %25 : vector<128x128xf32>
    %33 = math.rsqrt %29 : vector<1x128xf32>
    %34 = vector.broadcast %33 : vector<1x128xf32> to vector<128x128xf32>
    %35 = arith.mulf %32, %34 : vector<128x128xf32>
    %c0_14 = arith.constant 0 : index
    %c0_15 = arith.constant 0 : index
    %36 = vector.load %arg5[%c0_14, %c0_15] : memref<16x32xf32, #tpu.memory_space<vmem>>, vector<16x32xf32>
    %cst_16 = arith.constant dense<0.000000e+00> : vector<128x32xf32>
    %37 = tpu.matmul %7, %36, %cst_16 {dimension_numbers = #tpu.dot_dimension_numbers<[1], [0], [0], [1], [0, 0, 1, 1], [], []>} : vector<128x16xf32>, vector<16x32xf32>, vector<128x32xf32> -> vector<128x32xf32>
    %cst_17 = arith.constant dense<0.000000e+00> : vector<128x32xf32>
    %38 = tpu.matmul %35, %37, %cst_17 {dimension_numbers = #tpu.dot_dimension_numbers<[1], [0], [0], [1], [0, 0, 1, 1], [], []>} : vector<128x128xf32>, vector<128x32xf32>, vector<128x32xf32> -> vector<128x32xf32>
    %c0_18 = arith.constant 0 : index
    %c0_19 = arith.constant 0 : index
    %39 = vector.load %arg6[%c0_18, %c0_19] : memref<1x32xf32, #tpu.memory_space<vmem>>, vector<1x32xf32>
    %40 = vector.broadcast %39 : vector<1x32xf32> to vector<128x32xf32>
    %41 = arith.addf %38, %40 : vector<128x32xf32>
    %cst_20 = arith.constant 0.000000e+00 : f32
    %42 = vector.broadcast %cst_20 : f32 to vector<128x32xf32>
    %43 = arith.maximumf %41, %42 : vector<128x32xf32>
    %c0_21 = arith.constant 0 : index
    %c0_22 = arith.constant 0 : index
    %44 = vector.load %arg7[%c0_21, %c0_22] : memref<32x16xf32, #tpu.memory_space<vmem>>, vector<32x16xf32>
    %cst_23 = arith.constant dense<0.000000e+00> : vector<128x16xf32>
    %45 = tpu.matmul %43, %44, %cst_23 {dimension_numbers = #tpu.dot_dimension_numbers<[1], [0], [0], [1], [0, 0, 1, 1], [], []>} : vector<128x32xf32>, vector<32x16xf32>, vector<128x16xf32> -> vector<128x16xf32>
    %cst_24 = arith.constant dense<0.000000e+00> : vector<128x16xf32>
    %46 = tpu.matmul %35, %45, %cst_24 {dimension_numbers = #tpu.dot_dimension_numbers<[1], [0], [0], [1], [0, 0, 1, 1], [], []>} : vector<128x128xf32>, vector<128x16xf32>, vector<128x16xf32> -> vector<128x16xf32>
    %c0_25 = arith.constant 0 : index
    %c0_26 = arith.constant 0 : index
    %47 = vector.load %arg8[%c0_25, %c0_26] : memref<1x16xf32, #tpu.memory_space<vmem>>, vector<1x16xf32>
    %48 = vector.broadcast %47 : vector<1x16xf32> to vector<128x16xf32>
    %49 = arith.addf %46, %48 : vector<128x16xf32>
    %c0_27 = arith.constant 0 : index
    %c0_28 = arith.constant 0 : index
    %c0_29 = arith.constant 0 : index
    %50 = vector.load %arg9[%c0_27, %c0_28, %c0_29] : memref<1x128x16xf32, #tpu.memory_space<vmem>>, vector<1x128x16xf32>
    %51 = vector.shape_cast %50 : vector<1x128x16xf32> to vector<128x16xf32>
    %52 = vector.shape_cast %49 : vector<128x16xf32> to vector<1x128x16xf32>
    tpu.vector_store %arg9[%c0_27, %c0_28, %c0_29], %52 {strides = array<i32>} : memref<1x128x16xf32, #tpu.memory_space<vmem>>, vector<1x128x16xf32>,
    return
  }
  func.func @transform_0(%arg0: i32) -> (i32, i32, i32) {
    %c0_i32 = arith.constant 0 : i32
    %c0_i32_0 = arith.constant 0 : i32
    %c0_i32_1 = arith.constant 0 : i32
    return %arg0, %c0_i32, %c0_i32_0 : i32, i32, i32
  }
  func.func @transform_1(%arg0: i32) -> (i32, i32, i32) {
    %c0_i32 = arith.constant 0 : i32
    %c0_i32_0 = arith.constant 0 : i32
    %c0_i32_1 = arith.constant 0 : i32
    return %arg0, %c0_i32, %c0_i32_0 : i32, i32, i32
  }
  func.func @transform_2(%arg0: i32) -> (i32, i32, i32) {
    %c0_i32 = arith.constant 0 : i32
    %c0_i32_0 = arith.constant 0 : i32
    %c0_i32_1 = arith.constant 0 : i32
    return %arg0, %c0_i32, %c0_i32_0 : i32, i32, i32
  }
  func.func @transform_3(%arg0: i32) -> (i32, i32, i32) {
    %c0_i32 = arith.constant 0 : i32
    %c0_i32_0 = arith.constant 0 : i32
    %c0_i32_1 = arith.constant 0 : i32
    return %arg0, %c0_i32, %c0_i32_0 : i32, i32, i32
  }
  func.func @transform_4(%arg0: i32) -> (i32, i32) {
    %c0_i32 = arith.constant 0 : i32
    %c0_i32_0 = arith.constant 0 : i32
    %c0_i32_1 = arith.constant 0 : i32
    return %c0_i32, %c0_i32_0 : i32, i32
  }
  func.func @transform_5(%arg0: i32) -> (i32, i32) {
    %c0_i32 = arith.constant 0 : i32
    %c0_i32_0 = arith.constant 0 : i32
    %c0_i32_1 = arith.constant 0 : i32
    return %c0_i32, %c0_i32_0 : i32, i32
  }
  func.func @transform_6(%arg0: i32) -> (i32, i32) {
    %c0_i32 = arith.constant 0 : i32
    %c0_i32_0 = arith.constant 0 : i32
    %c0_i32_1 = arith.constant 0 : i32
    return %c0_i32, %c0_i32_0 : i32, i32
  }
  func.func @transform_7(%arg0: i32) -> (i32, i32) {
    %c0_i32 = arith.constant 0 : i32
    %c0_i32_0 = arith.constant 0 : i32
    %c0_i32_1 = arith.constant 0 : i32
    return %c0_i32, %c0_i32_0 : i32, i32
  }
  func.func @transform_8(%arg0: i32) -> (i32, i32, i32) {
    %c0_i32 = arith.constant 0 : i32
    %c0_i32_0 = arith.constant 0 : i32
    %c0_i32_1 = arith.constant 0 : i32
    return %arg0, %c0_i32, %c0_i32_0 : i32, i32, i32
  }
}

</mosaic_0001>

<llo_original>
// kernel: gae_forward.1
$region0: #{gae_forward.1}
  #allocation0 [shape = 'u32[]', space=smem, size = 0x4, offset = 0x4, fixed_abs, tag = 'smem constant byte address 0x4 - core index']
  #allocation1 [shape = 'u32[72,128]{1,0:T(1,128)}', space=vmem, size = 0x9000, scoped, tag = 'internal scratch']
  %s0 = inlined_call_operand.vmem [shape: s32[4,1,512], index: 0, kind: input, shape index: {}]
  %s1 = inlined_call_operand.vmem [shape: s32[4,1,512], index: 1, kind: input, shape index: {}]
  %s2 = inlined_call_operand.vmem [shape: f32[4,1,512], index: 2, kind: input, shape index: {}]
  %s3 = inlined_call_operand.vmem [shape: f32[4,128,16], index: 3, kind: input, shape index: {}]
  %s4 = inlined_call_operand.vmem [shape: f32[16,32], index: 4, kind: input, shape index: {}]
  %s5 = inlined_call_operand.vmem [shape: f32[1,32], index: 5, kind: input, shape index: {}]
  %s6 = inlined_call_operand.vmem [shape: f32[32,16], index: 6, kind: input, shape index: {}]
  %s7 = inlined_call_operand.vmem [shape: f32[1,16], index: 7, kind: input, shape index: {}]
  %s8 = inlined_call_operand.vmem [shape: f32[4,128,16], index: 8, kind: output, shape index: {}]
  %s9 = sld [smem:[#allocation0]]
  $region65: #{gae_forward.1} parent=0
    _
  %s11 = ssub.s32 1, %s9
  %s12 = scalar_select 0, %s11, %s9
  loop: start=0, step=1, limit=6
  $region2: #{gae_forward.1} parent=0 // loop_pre_header
    _
  $region3: #{gae_forward.1} parent=0 // loop_header
    %s14 = sphi 0, %s18
    %p15 = scmp.ge.s32.totalorder %s14, 6
    %s24 = sphi 0, %s26
    %s27 = sphi 0, %s24
    %s28 = sphi 0, %s27
    %s44 = sphi 0, %s28
    %s50 = sphi 0, %s52
    %s53 = sphi 0, %s50
    %s54 = sphi 0, %s53
    %s70 = sphi 0, %s54
    %s76 = sphi 0, %s78
    %s79 = sphi 0, %s76
    %s80 = sphi 0, %s79
    %s96 = sphi 0, %s80
    %s102 = sphi 0, %s104
    %s105 = sphi 0, %s102
    %s106 = sphi 0, %s105
    %s122 = sphi 0, %s106
    %s126 = sphi 0, %s126
    %s128 = sphi 0, %s126
    %s129 = sphi 0, %s128
    %s143 = sphi 0, %s129
    %s147 = sphi 0, %s147
    %s149 = sphi 0, %s147
    %s150 = sphi 0, %s149
    %s164 = sphi 0, %s150
    %s168 = sphi 0, %s168
    %s170 = sphi 0, %s168
    %s171 = sphi 0, %s170
    %s185 = sphi 0, %s171
    %s189 = sphi 0, %s189
    %s191 = sphi 0, %s189
    %s192 = sphi 0, %s191
    %s206 = sphi 0, %s192
    %s212 = sphi 0, %s214
    %s215 = sphi 0, %s212
    %s216 = sphi 0, %s215
    %s232 = sphi 0, %s216
  $region4: #{gae_forward.1} parent=0 // loop_header_branch
    %17 = sbr.rel (%p15) target = $region8
  $region5: #{gae_forward.1} parent=0 // loop_body
    %s19 = ssub.s32 %s14, 1
    %s20 = ssub.s32 %s14, 2
    %s21 = sadd.s32 %s14, 1
    %s22 = ssub.s32 %s14, %s21
    %p23 = scmp.eq.s32.totalorder %s22, 0
    %s25 = sadd.s32 %s24, 1
    %s26 = scalar_select %p23, %s24, %s25
    %p29 = pneg %p23
    %p30 = scmp.eq.s32.totalorder %s14, 3
    %p31 = por %p29, %p30
    %p32 = scmp.ne.s32.totalorder %s24, %s27
    %p33 = scmp.eq.s32.totalorder %s14, 0
    %p34 = por %p32, %p33
    %p35 = scmp.ne.s32.totalorder %s24, %s27
    %p36 = scmp.eq.s32.totalorder %s19, 3
    %p37 = por %p35, %p36
    %p38 = scmp.ne.s32.totalorder %s27, %s28
    %p39 = scmp.eq.s32.totalorder %s19, 0
    %p40 = por %p38, %p39
    %p41 = scmp.ne.s32.totalorder %s27, %s28
    %p42 = scmp.eq.s32.totalorder %s20, 3
    %p43 = por %p41, %p42
    %p45 = scmp.ne.s32.totalorder %s28, %s44
    %p46 = scmp.eq.s32.totalorder %s20, 0
    %p47 = por %p45, %p46
    %s48 = ssub.s32 %s14, %s21
    %p49 = scmp.eq.s32.totalorder %s48, 0
    %s51 = sadd.s32 %s50, 1
    %s52 = scalar_select %p49, %s50, %s51
    %p55 = pneg %p49
    %p56 = scmp.eq.s32.totalorder %s14, 3
    %p57 = por %p55, %p56
    %p58 = scmp.ne.s32.totalorder %s50, %s53
    %p59 = scmp.eq.s32.totalorder %s14, 0
    %p60 = por %p58, %p59
    %p61 = scmp.ne.s32.totalorder %s50, %s53
    %p62 = scmp.eq.s32.totalorder %s19, 3
    %p63 = por %p61, %p62
    %p64 = scmp.ne.s32.totalorder %s53, %s54
    %p65 = scmp.eq.s32.totalorder %s19, 0
    %p66 = por %p64, %p65
    %p67 = scmp.ne.s32.totalorder %s53, %s54
    %p68 = scmp.eq.s32.totalorder %s20, 3
    %p69 = por %p67, %p68
    %p71 = scmp.ne.s32.totalorder %s54, %s70
    %p72 = scmp.eq.s32.totalorder %s20, 0
    %p73 = por %p71, %p72
    %s74 = ssub.s32 %s14, %s21
    %p75 = scmp.eq.s32.totalorder %s74, 0
    %s77 = sadd.s32 %s76, 1
    %s78 = scalar_select %p75, %s76, %s77
    %p81 = pneg %p75
    %p82 = scmp.eq.s32.totalorder %s14, 3
    %p83 = por %p81, %p82
    %p84 = scmp.ne.s32.totalorder %s76, %s79
    %p85 = scmp.eq.s32.totalorder %s14, 0
    %p86 = por %p84, %p85
    %p87 = scmp.ne.s32.totalorder %s76, %s79
    %p88 = scmp.eq.s32.totalorder %s19, 3
    %p89 = por %p87, %p88
    %p90 = scmp.ne.s32.totalorder %s79, %s80
    %p91 = scmp.eq.s32.totalorder %s19, 0
    %p92 = por %p90, %p91
    %p93 = scmp.ne.s32.totalorder %s79, %s80
    %p94 = scmp.eq.s32.totalorder %s20, 3
    %p95 = por %p93, %p94
    %p97 = scmp.ne.s32.totalorder %s80, %s96
    %p98 = scmp.eq.s32.totalorder %s20, 0
    %p99 = por %p97, %p98
    %s100 = ssub.s32 %s14, %s21
    %p101 = scmp.eq.s32.totalorder %s100, 0
    %s103 = sadd.s32 %s102, 1
    %s104 = scalar_select %p101, %s102, %s103
    %p107 = pneg %p101
    %p108 = scmp.eq.s32.totalorder %s14, 3
    %p109 = por %p107, %p108
    %p110 = scmp.ne.s32.totalorder %s102, %s105
    %p111 = scmp.eq.s32.totalorder %s14, 0
    %p112 = por %p110, %p111
    %p113 = scmp.ne.s32.totalorder %s102, %s105
    %p114 = scmp.eq.s32.totalorder %s19, 3
    %p115 = por %p113, %p114
    %p116 = scmp.ne.s32.totalorder %s105, %s106
    %p117 = scmp.eq.s32.totalorder %s19, 0
    %p118 = por %p116, %p117
    %p119 = scmp.ne.s32.totalorder %s105, %s106
    %p120 = scmp.eq.s32.totalorder %s20, 3
    %p121 = por %p119, %p120
    %p123 = scmp.ne.s32.totalorder %s106, %s122
    %p124 = scmp.eq.s32.totalorder %s20, 0
    %p125 = por %p123, %p124
    %s127 = sadd.s32 %s126, 1
    %p130 = scmp.eq.s32.totalorder %s14, 3
    %p131 = scmp.ne.s32.totalorder %s126, %s128
    %p132 = scmp.eq.s32.totalorder %s14, 0
    %p133 = por %p131, %p132
    %p134 = scmp.ne.s32.totalorder %s126, %s128
    %p135 = scmp.eq.s32.totalorder %s19, 3
    %p136 = por %p134, %p135
    %p137 = scmp.ne.s32.totalorder %s128, %s129
    %p138 = scmp.eq.s32.totalorder %s19, 0
    %p139 = por %p137, %p138
    %p140 = scmp.ne.s32.totalorder %s128, %s129
    %p141 = scmp.eq.s32.totalorder %s20, 3
    %p142 = por %p140, %p141
    %p144 = scmp.ne.s32.totalorder %s129, %s143
    %p145 = scmp.eq.s32.totalorder %s20, 0
    %p146 = por %p144, %p145
    %s148 = sadd.s32 %s147, 1
    %p151 = scmp.eq.s32.totalorder %s14, 3
    %p152 = scmp.ne.s32.totalorder %s147, %s149
    %p153 = scmp.eq.s32.totalorder %s14, 0
    %p154 = por %p152, %p153
    %p155 = scmp.ne.s32.totalorder %s147, %s149
    %p156 = scmp.eq.s32.totalorder %s19, 3
    %p157 = por %p155, %p156
    %p158 = scmp.ne.s32.totalorder %s149, %s150
    %p159 = scmp.eq.s32.totalorder %s19, 0
    %p160 = por %p158, %p159
    %p161 = scmp.ne.s32.totalorder %s149, %s150
    %p162 = scmp.eq.s32.totalorder %s20, 3
    %p163 = por %p161, %p162
    %p165 = scmp.ne.s32.totalorder %s150, %s164
    %p166 = scmp.eq.s32.totalorder %s20, 0
    %p167 = por %p165, %p166
    %s169 = sadd.s32 %s168, 1
    %p172 = scmp.eq.s32.totalorder %s14, 3
    %p173 = scmp.ne.s32.totalorder %s168, %s170
    %p174 = scmp.eq.s32.totalorder %s14, 0
    %p175 = por %p173, %p174
    %p176 = scmp.ne.s32.totalorder %s168, %s170
    %p177 = scmp.eq.s32.totalorder %s19, 3
    %p178 = por %p176, %p177
    %p179 = scmp.ne.s32.totalorder %s170, %s171
    %p180 = scmp.eq.s32.totalorder %s19, 0
    %p181 = por %p179, %p180
    %p182 = scmp.ne.s32.totalorder %s170, %s171
    %p183 = scmp.eq.s32.totalorder %s20, 3
    %p184 = por %p182, %p183
    %p186 = scmp.ne.s32.totalorder %s171, %s185
    %p187 = scmp.eq.s32.totalorder %s20, 0
    %p188 = por %p186, %p187
    %s190 = sadd.s32 %s189, 1
    %p193 = scmp.eq.s32.totalorder %s14, 3
    %p194 = scmp.ne.s32.totalorder %s189, %s191
    %p195 = scmp.eq.s32.totalorder %s14, 0
    %p196 = por %p194, %p195
    %p197 = scmp.ne.s32.totalorder %s189, %s191
    %p198 = scmp.eq.s32.totalorder %s19, 3
    %p199 = por %p197, %p198
    %p200 = scmp.ne.s32.totalorder %s191, %s192
    %p201 = scmp.eq.s32.totalorder %s19, 0
    %p202 = por %p200, %p201
    %p203 = scmp.ne.s32.totalorder %s191, %s192
    %p204 = scmp.eq.s32.totalorder %s20, 3
    %p205 = por %p203, %p204
    %p207 = scmp.ne.s32.totalorder %s192, %s206
    %p208 = scmp.eq.s32.totalorder %s20, 0
    %p209 = por %p207, %p208
    %s210 = ssub.s32 %s14, %s21
    %p211 = scmp.eq.s32.totalorder %s210, 0
    %s213 = sadd.s32 %s212, 1
    %s214 = scalar_select %p211, %s212, %s213
    %p217 = pneg %p211
    %p218 = scmp.eq.s32.totalorder %s14, 3
    %p219 = por %p217, %p218
    %p220 = scmp.ne.s32.totalorder %s212, %s215
    %p221 = scmp.eq.s32.totalorder %s14, 0
    %p222 = por %p220, %p221
    %p223 = scmp.ne.s32.totalorder %s212, %s215
    %p224 = scmp.eq.s32.totalorder %s19, 3
    %p225 = por %p223, %p224
    %p226 = scmp.ne.s32.totalorder %s215, %s216
    %p227 = scmp.eq.s32.totalorder %s19, 0
    %p228 = por %p226, %p227
    %p229 = scmp.ne.s32.totalorder %s215, %s216
    %p230 = scmp.eq.s32.totalorder %s20, 3
    %p231 = por %p229, %p230
    %p233 = scmp.ne.s32.totalorder %s216, %s232
    %p234 = scmp.eq.s32.totalorder %s20, 0
    %p235 = por %p233, %p234
    %p236 = scmp.le.s32.totalorder 1, %s14
    %p237 = scmp.lt.s32.totalorder %s14, 5
    %p238 = pnand %p236, %p237
    %p239 = pneg %p238
    // Predicated region
    $region9: #{gae_forward.1} parent=5 // pred_check
      _
    $region10: #{gae_forward.1} parent=5 // pred_check_branch
      %241 = sbr.rel (%p238) target = $region12
    $region11: #{gae_forward.1} parent=5 // pred_region
      %s242 = ssub.s32 %s14, 1
      // Predicated region
      $region13: #{gae_forward.1} parent=11 // pred_check
        %p243 = pneg %p139
      $region14: #{gae_forward.1} parent=11 // pred_check_branch
        %245 = sbr.rel (%p243) target = $region16
      $region15: #{gae_forward.1} parent=11 // pred_region
        _
      $region16: #{gae_forward.1} parent=11 // pred_fallthru
        _
      // Predicated region
      $region17: #{gae_forward.1} parent=11 // pred_check
        %p246 = pneg %p160
      $region18: #{gae_forward.1} parent=11 // pred_check_branch
        %248 = sbr.rel (%p246) target = $region20
      $region19: #{gae_forward.1} parent=11 // pred_region
        _
      $region20: #{gae_forward.1} parent=11 // pred_fallthru
        _
      // Predicated region
      $region21: #{gae_forward.1} parent=11 // pred_check
        %p249 = pneg %p181
      $region22: #{gae_forward.1} parent=11 // pred_check_branch
        %251 = sbr.rel (%p249) target = $region24
      $region23: #{gae_forward.1} parent=11 // pred_region
        _
      $region24: #{gae_forward.1} parent=11 // pred_fallthru
        _
      // Predicated region
      $region25: #{gae_forward.1} parent=11 // pred_check
        %p252 = pneg %p202
      $region26: #{gae_forward.1} parent=11 // pred_check_branch
        %254 = sbr.rel (%p252) target = $region28
      $region27: #{gae_forward.1} parent=11 // pred_region
        _
      $region28: #{gae_forward.1} parent=11 // pred_fallthru
        _
    $region12: #{gae_forward.1} parent=5 // pred_fallthru
      _
    %p255 = scmp.lt.s32.totalorder %s14, 4
    // Predicated region
    $region29: #{gae_forward.1} parent=5 // pred_check
      %p256 = pneg %p255
    $region30: #{gae_forward.1} parent=5 // pred_check_branch
      %258 = sbr.rel (%p256) target = $region32
    $region31: #{gae_forward.1} parent=5 // pred_region
      // Predicated region
      $region33: #{gae_forward.1} parent=31 // pred_check
        %p259 = pneg %p34
      $region34: #{gae_forward.1} parent=31 // pred_check_branch
        %261 = sbr.rel (%p259) target = $region36
      $region35: #{gae_forward.1} parent=31 // pred_region
        %p262 = scmp.lt.s32.totalorder %s14, 3
        %s263 = scalar_select %p262, %s14, 3
        %s264 = smul.addr %s263, 4
        %s265 = scalar_lea.vmem %s0, %s264
      $region36: #{gae_forward.1} parent=31 // pred_fallthru
        _
      // Predicated region
      $region37: #{gae_forward.1} parent=31 // pred_check
        %p266 = pneg %p60
      $region38: #{gae_forward.1} parent=31 // pred_check_branch
        %268 = sbr.rel (%p266) target = $region40
      $region39: #{gae_forward.1} parent=31 // pred_region
        %p269 = scmp.lt.s32.totalorder %s14, 3
        %s270 = scalar_select %p269, %s14, 3
        %s271 = smul.addr %s270, 4
        %s272 = scalar_lea.vmem %s1, %s271
      $region40: #{gae_forward.1} parent=31 // pred_fallthru
        _
      // Predicated region
      $region41: #{gae_forward.1} parent=31 // pred_check
        %p273 = pneg %p86
      $region42: #{gae_forward.1} parent=31 // pred_check_branch
        %275 = sbr.rel (%p273) target = $region44
      $region43: #{gae_forward.1} parent=31 // pred_region
        %p276 = scmp.lt.s32.totalorder %s14, 3
        %s277 = scalar_select %p276, %s14, 3
        %s278 = smul.addr %s277, 4
        %s279 = scalar_lea.vmem %s2, %s278
      $region44: #{gae_forward.1} parent=31 // pred_fallthru
        _
      // Predicated region
      $region45: #{gae_forward.1} parent=31 // pred_check
        %p280 = pneg %p112
      $region46: #{gae_forward.1} parent=31 // pred_check_branch
        %282 = sbr.rel (%p280) target = $region48
      $region47: #{gae_forward.1} parent=31 // pred_region
        %p283 = scmp.lt.s32.totalorder %s14, 3
        %s284 = scalar_select %p283, %s14, 3
        %s285 = smul.addr %s284, 16
        %s286 = smul.addr %s285, 8
        %s287 = scalar_lea.vmem %s3, %s286
      $region48: #{gae_forward.1} parent=31 // pred_fallthru
        _
    $region32: #{gae_forward.1} parent=5 // pred_fallthru
      _
    %p288 = scmp.le.s32.totalorder 1, %s14
    %p289 = scmp.lt.s32.totalorder %s14, 5
    %p290 = pnand %p288, %p289
    %p291 = pneg %p290
    // Predicated region
    $region49: #{gae_forward.1} parent=5 // pred_check
      _
    $region50: #{gae_forward.1} parent=5 // pred_check_branch
      %293 = sbr.rel (%p290) target = $region52
    $region51: #{gae_forward.1} parent=5 // pred_region
      %s294 = ssub.s32 %s14, 1
      %p295 = scmp.lt.s32.totalorder %s19, 3
      %s296 = scalar_select %p295, %s19, 3
      %s297 = smul.addr %s296, 4
      %s298 = scalar_lea.vmem %s0, %s297
      %p299 = pneg %p40
      %p300 = pneg %p37
      %p301 = scmp.lt.s32.totalorder %s19, 3
      %s302 = scalar_select %p301, %s19, 3
      %s303 = smul.addr %s302, 4
      %s304 = scalar_lea.vmem %s1, %s303
      %p305 = pneg %p66
      %p306 = pneg %p63
      %p307 = scmp.lt.s32.totalorder %s19, 3
      %s308 = scalar_select %p307, %s19, 3
      %s309 = smul.addr %s308, 4
      %s310 = scalar_lea.vmem %s2, %s309
      %p311 = pneg %p92
      %p312 = pneg %p89
      %p313 = scmp.lt.s32.totalorder %s19, 3
      %s314 = scalar_select %p313, %s19, 3
      %s315 = smul.addr %s314, 16
      %s316 = smul.addr %s315, 8
      %s317 = scalar_lea.vmem %s3, %s316
      %p318 = pneg %p118
      %p319 = pneg %p115
      %p320 = pneg %p139
      %p321 = pneg %p136
      %p322 = pneg %p160
      %p323 = pneg %p157
      %p324 = pneg %p181
      %p325 = pneg %p178
      %p326 = pneg %p202
      %p327 = pneg %p199
      %p328 = pneg %p228
      %p329 = pneg %p225
      %p330 = scmp.lt.s32.totalorder %s19, 3
      %s331 = scalar_select %p330, %s19, 3
      %s332 = smul.addr %s331, 16
      %s333 = smul.addr %s332, 8
      %s334 = scalar_lea.vmem %s8, %s333
      %p335 = scmp.lt.s32.totalorder %s19, 3
      %s336 = scalar_select %p335, %s19, 3
      %s337 = smul.addr %s336, 4
      %s338 = scalar_lea.vmem %s0, %s337
      %p339 = scmp.lt.s32.totalorder %s19, 3
      %s340 = scalar_select %p339, %s19, 3
      %s341 = smul.addr %s340, 4
      %s342 = scalar_lea.vmem %s1, %s341
      %p343 = scmp.lt.s32.totalorder %s19, 3
      %s344 = scalar_select %p343, %s19, 3
      %s345 = smul.addr %s344, 4
      %s346 = scalar_lea.vmem %s2, %s345
      %p347 = scmp.lt.s32.totalorder %s19, 3
      %s348 = scalar_select %p347, %s19, 3
      %s349 = smul.addr %s348, 16
      %s350 = smul.addr %s349, 8
      %s351 = scalar_lea.vmem %s3, %s350
      %p352 = scmp.lt.s32.totalorder %s19, 3
      %s353 = scalar_select %p352, %s19, 3
      %s354 = smul.addr %s353, 16
      %s355 = smul.addr %s354, 8
      %s356 = scalar_lea.vmem %s8, %s355
      %v357 = vld [vmem:[%s338] sm:$0xf]
      %v358 = vld [vmem:[%s342] sm:$0xf]
      %v359 = vld [vmem:[%s346] sm:$0xf]
      %v360 = vld [vmem:[%s351] sm:$0xff]
      %v361 = vld [vmem:[%s351 + $0x8] sm:$0xff]
      %v362 = vld [vmem:[%s351 + $0x10] sm:$0xff]
      %v363 = vld [vmem:[%s351 + $0x18] sm:$0xff]
      %v364 = vld [vmem:[%s351 + $0x20] sm:$0xff]
      %v365 = vld [vmem:[%s351 + $0x28] sm:$0xff]
      %v366 = vld [vmem:[%s351 + $0x30] sm:$0xff]
      %v367 = vld [vmem:[%s351 + $0x38] sm:$0xff]
      %v368 = vld [vmem:[%s351 + $0x40] sm:$0xff]
      %v369 = vld [vmem:[%s351 + $0x48] sm:$0xff]
      %v370 = vld [vmem:[%s351 + $0x50] sm:$0xff]
      %v371 = vld [vmem:[%s351 + $0x58] sm:$0xff]
      %v372 = vld [vmem:[%s351 + $0x60] sm:$0xff]
      %v373 = vld [vmem:[%s351 + $0x68] sm:$0xff]
      %v374 = vld [vmem:[%s351 + $0x70] sm:$0xff]
      %v375 = vld [vmem:[%s351 + $0x78] sm:$0xff]
      %v376 = vlaneseq
      %v377 = vshrl.u32 %v376, 7
      %v378 = vadd.s32 %v377, 8
      %v379 = vadd.s32 %v377, 16
      %v380 = vadd.s32 %v377, 24
      %v381 = vadd.s32 %v377, 32
      %v382 = vadd.s32 %v377, 40
      %v383 = vadd.s32 %v377, 48
      %v384 = vadd.s32 %v377, 56
      %v385 = vadd.s32 %v377, 64
      %v386 = vadd.s32 %v377, 72
      %v387 = vadd.s32 %v377, 80
      %v388 = vadd.s32 %v377, 88
      %v389 = vadd.s32 %v377, 96
      %v390 = vadd.s32 %v377, 104
      %v391 = vadd.s32 %v377, 112
      %v392 = vadd.s32 %v377, 120
      %v393 = vperm.slane %v357, 0
      %v394 = vperm.slane %v357, 1
      %v395 = vperm.slane %v357, 2
      %v396 = vperm.slane %v357, 3
      %vm397 = vcmp.eq.s32.totalorder %v377, %v393
      %vm398 = vcmp.eq.s32.totalorder %v377, %v394
      %vm399 = vcmp.eq.s32.totalorder %v377, %v395
      %vm400 = vcmp.eq.s32.totalorder %v377, %v396
      %vm401 = vcmp.eq.s32.totalorder %v378, %v393
      %vm402 = vcmp.eq.s32.totalorder %v378, %v394
      %vm403 = vcmp.eq.s32.totalorder %v378, %v395
      %vm404 = vcmp.eq.s32.totalorder %v378, %v396
      %vm405 = vcmp.eq.s32.totalorder %v379, %v393
      %vm406 = vcmp.eq.s32.totalorder %v379, %v394
      %vm407 = vcmp.eq.s32.totalorder %v379, %v395
      %vm408 = vcmp.eq.s32.totalorder %v379, %v396
      %vm409 = vcmp.eq.s32.totalorder %v380, %v393
      %vm410 = vcmp.eq.s32.totalorder %v380, %v394
      %vm411 = vcmp.eq.s32.totalorder %v380, %v395
      %vm412 = vcmp.eq.s32.totalorder %v380, %v396
      %vm413 = vcmp.eq.s32.totalorder %v381, %v393
      %vm414 = vcmp.eq.s32.totalorder %v381, %v394
      %vm415 = vcmp.eq.s32.totalorder %v381, %v395
      %vm416 = vcmp.eq.s32.totalorder %v381, %v396
      %vm417 = vcmp.eq.s32.totalorder %v382, %v393
      %vm418 = vcmp.eq.s32.totalorder %v382, %v394
      %vm419 = vcmp.eq.s32.totalorder %v382, %v395
      %vm420 = vcmp.eq.s32.totalorder %v382, %v396
      %vm421 = vcmp.eq.s32.totalorder %v383, %v393
      %vm422 = vcmp.eq.s32.totalorder %v383, %v394
      %vm423 = vcmp.eq.s32.totalorder %v383, %v395
      %vm424 = vcmp.eq.s32.totalorder %v383, %v396
      %vm425 = vcmp.eq.s32.totalorder %v384, %v393
      %vm426 = vcmp.eq.s32.totalorder %v384, %v394
      %vm427 = vcmp.eq.s32.totalorder %v384, %v395
      %vm428 = vcmp.eq.s32.totalorder %v384, %v396
      %vm429 = vcmp.eq.s32.totalorder %v385, %v393
      %vm430 = vcmp.eq.s32.totalorder %v385, %v394
      %vm431 = vcmp.eq.s32.totalorder %v385, %v395
      %vm432 = vcmp.eq.s32.totalorder %v385, %v396
      %vm433 = vcmp.eq.s32.totalorder %v386, %v393
      %vm434 = vcmp.eq.s32.totalorder %v386, %v394
      %vm435 = vcmp.eq.s32.totalorder %v386, %v395
      %vm436 = vcmp.eq.s32.totalorder %v386, %v396
      %vm437 = vcmp.eq.s32.totalorder %v387, %v393
      %vm438 = vcmp.eq.s32.totalorder %v387, %v394
      %vm439 = vcmp.eq.s32.totalorder %v387, %v395
      %vm440 = vcmp.eq.s32.totalorder %v387, %v396
      %vm441 = vcmp.eq.s32.totalorder %v388, %v393
      %vm442 = vcmp.eq.s32.totalorder %v388, %v394
      %vm443 = vcmp.eq.s32.totalorder %v388, %v395
      %vm444 = vcmp.eq.s32.totalorder %v388, %v396
      %vm445 = vcmp.eq.s32.totalorder %v389, %v393
      %vm446 = vcmp.eq.s32.totalorder %v389, %v394
      %vm447 = vcmp.eq.s32.totalorder %v389, %v395
      %vm448 = vcmp.eq.s32.totalorder %v389, %v396
      %vm449 = vcmp.eq.s32.totalorder %v390, %v393
      %vm450 = vcmp.eq.s32.totalorder %v390, %v394
      %vm451 = vcmp.eq.s32.totalorder %v390, %v395
      %vm452 = vcmp.eq.s32.totalorder %v390, %v396
      %vm453 = vcmp.eq.s32.totalorder %v391, %v393
      %vm454 = vcmp.eq.s32.totalorder %v391, %v394
      %vm455 = vcmp.eq.s32.totalorder %v391, %v395
      %vm456 = vcmp.eq.s32.totalorder %v391, %v396
      %vm457 = vcmp.eq.s32.totalorder %v392, %v393
      %vm458 = vcmp.eq.s32.totalorder %v392, %v394
      %vm459 = vcmp.eq.s32.totalorder %v392, %v395
      %vm460 = vcmp.eq.s32.totalorder %v392, %v396
      %v461 = vsel %vm397, 1, 0
      %v462 = vsel %vm398, 1, 0
      %v463 = vsel %vm399, 1, 0
      %v464 = vsel %vm400, 1, 0
      %v465 = vsel %vm401, 1, 0
      %v466 = vsel %vm402, 1, 0
      %v467 = vsel %vm403, 1, 0
      %v468 = vsel %vm404, 1, 0
      %v469 = vsel %vm405, 1, 0
      %v470 = vsel %vm406, 1, 0
      %v471 = vsel %vm407, 1, 0
      %v472 = vsel %vm408, 1, 0
      %v473 = vsel %vm409, 1, 0
      %v474 = vsel %vm410, 1, 0
      %v475 = vsel %vm411, 1, 0
      %v476 = vsel %vm412, 1, 0
      %v477 = vsel %vm413, 1, 0
      %v478 = vsel %vm414, 1, 0
      %v479 = vsel %vm415, 1, 0
      %v480 = vsel %vm416, 1, 0
      %v481 = vsel %vm417, 1, 0
      %v482 = vsel %vm418, 1, 0
      %v483 = vsel %vm419, 1, 0
      %v484 = vsel %vm420, 1, 0
      %v485 = vsel %vm421, 1, 0
      %v486 = vsel %vm422, 1, 0
      %v487 = vsel %vm423, 1, 0
      %v488 = vsel %vm424, 1, 0
      %v489 = vsel %vm425, 1, 0
      %v490 = vsel %vm426, 1, 0
      %v491 = vsel %vm427, 1, 0
      %v492 = vsel %vm428, 1, 0
      %v493 = vsel %vm429, 1, 0
      %v494 = vsel %vm430, 1, 0
      %v495 = vsel %vm431, 1, 0
      %v496 = vsel %vm432, 1, 0
      %v497 = vsel %vm433, 1, 0
      %v498 = vsel %vm434, 1, 0
      %v499 = vsel %vm435, 1, 0
      %v500 = vsel %vm436, 1, 0
      %v501 = vsel %vm437, 1, 0
      %v502 = vsel %vm438, 1, 0
      %v503 = vsel %vm439, 1, 0
      %v504 = vsel %vm440, 1, 0
      %v505 = vsel %vm441, 1, 0
      %v506 = vsel %vm442, 1, 0
      %v507 = vsel %vm443, 1, 0
      %v508 = vsel %vm444, 1, 0
      %v509 = vsel %vm445, 1, 0
      %v510 = vsel %vm446, 1, 0
      %v511 = vsel %vm447, 1, 0
      %v512 = vsel %vm448, 1, 0
      %v513 = vsel %vm449, 1, 0
      %v514 = vsel %vm450, 1, 0
      %v515 = vsel %vm451, 1, 0
      %v516 = vsel %vm452, 1, 0
      %v517 = vsel %vm453, 1, 0
      %v518 = vsel %vm454, 1, 0
      %v519 = vsel %vm455, 1, 0
      %v520 = vsel %vm456, 1, 0
      %v521 = vsel %vm457, 1, 0
      %v522 = vsel %vm458, 1, 0
      %v523 = vsel %vm459, 1, 0
      %v524 = vsel %vm460, 1, 0
      %v525 = vcvt.s32.f32 %v461
      %v526 = vcvt.s32.f32 %v462
      %v527 = vcvt.s32.f32 %v463
      %v528 = vcvt.s32.f32 %v464
      %v529 = vcvt.s32.f32 %v465
      %v530 = vcvt.s32.f32 %v466
      %v531 = vcvt.s32.f32 %v467
      %v532 = vcvt.s32.f32 %v468
      %v533 = vcvt.s32.f32 %v469
      %v534 = vcvt.s32.f32 %v470
      %v535 = vcvt.s32.f32 %v471
      %v536 = vcvt.s32.f32 %v472
      %v537 = vcvt.s32.f32 %v473
      %v538 = vcvt.s32.f32 %v474
      %v539 = vcvt.s32.f32 %v475
      %v540 = vcvt.s32.f32 %v476
      %v541 = vcvt.s32.f32 %v477
      %v542 = vcvt.s32.f32 %v478
      %v543 = vcvt.s32.f32 %v479
      %v544 = vcvt.s32.f32 %v480
      %v545 = vcvt.s32.f32 %v481
      %v546 = vcvt.s32.f32 %v482
      %v547 = vcvt.s32.f32 %v483
      %v548 = vcvt.s32.f32 %v484
      %v549 = vcvt.s32.f32 %v485
      %v550 = vcvt.s32.f32 %v486
      %v551 = vcvt.s32.f32 %v487
      %v552 = vcvt.s32.f32 %v488
      %v553 = vcvt.s32.f32 %v489
      %v554 = vcvt.s32.f32 %v490
      %v555 = vcvt.s32.f32 %v491
      %v556 = vcvt.s32.f32 %v492
      %v557 = vcvt.s32.f32 %v493
      %v558 = vcvt.s32.f32 %v494
      %v559 = vcvt.s32.f32 %v495
      %v560 = vcvt.s32.f32 %v496
      %v561 = vcvt.s32.f32 %v497
      %v562 = vcvt.s32.f32 %v498
      %v563 = vcvt.s32.f32 %v499
      %v564 = vcvt.s32.f32 %v500
      %v565 = vcvt.s32.f32 %v501
      %v566 = vcvt.s32.f32 %v502
      %v567 = vcvt.s32.f32 %v503
      %v568 = vcvt.s32.f32 %v504
      %v569 = vcvt.s32.f32 %v505
      %v570 = vcvt.s32.f32 %v506
      %v571 = vcvt.s32.f32 %v507
      %v572 = vcvt.s32.f32 %v508
      %v573 = vcvt.s32.f32 %v509
      %v574 = vcvt.s32.f32 %v510
      %v575 = vcvt.s32.f32 %v511
      %v576 = vcvt.s32.f32 %v512
      %v577 = vcvt.s32.f32 %v513
      %v578 = vcvt.s32.f32 %v514
      %v579 = vcvt.s32.f32 %v515
      %v580 = vcvt.s32.f32 %v516
      %v581 = vcvt.s32.f32 %v517
      %v582 = vcvt.s32.f32 %v518
      %v583 = vcvt.s32.f32 %v519
      %v584 = vcvt.s32.f32 %v520
      %v585 = vcvt.s32.f32 %v521
      %v586 = vcvt.s32.f32 %v522
      %v587 = vcvt.s32.f32 %v523
      %v588 = vcvt.s32.f32 %v524
      %v589 = vperm.slane %v358, 0
      %v590 = vperm.slane %v358, 1
      %v591 = vperm.slane %v358, 2
      %v592 = vperm.slane %v358, 3
      %vm593 = vcmp.eq.s32.totalorder %v377, %v589
      %vm594 = vcmp.eq.s32.totalorder %v377, %v590
      %vm595 = vcmp.eq.s32.totalorder %v377, %v591
      %vm596 = vcmp.eq.s32.totalorder %v377, %v592
      %vm597 = vcmp.eq.s32.totalorder %v378, %v589
      %vm598 = vcmp.eq.s32.totalorder %v378, %v590
      %vm599 = vcmp.eq.s32.totalorder %v378, %v591
      %vm600 = vcmp.eq.s32.totalorder %v378, %v592
      %vm601 = vcmp.eq.s32.totalorder %v379, %v589
      %vm602 = vcmp.eq.s32.totalorder %v379, %v590
      %vm603 = vcmp.eq.s32.totalorder %v379, %v591
      %vm604 = vcmp.eq.s32.totalorder %v379, %v592
      %vm605 = vcmp.eq.s32.totalorder %v380, %v589
      %vm606 = vcmp.eq.s32.totalorder %v380, %v590
      %vm607 = vcmp.eq.s32.totalorder %v380, %v591
      %vm608 = vcmp.eq.s32.totalorder %v380, %v592
      %vm609 = vcmp.eq.s32.totalorder %v381, %v589
      %vm610 = vcmp.eq.s32.totalorder %v381, %v590
      %vm611 = vcmp.eq.s32.totalorder %v381, %v591
      %vm612 = vcmp.eq.s32.totalorder %v381, %v592
      %vm613 = vcmp.eq.s32.totalorder %v382, %v589
      %vm614 = vcmp.eq.s32.totalorder %v382, %v590
      %vm615 = vcmp.eq.s32.totalorder %v382, %v591
      %vm616 = vcmp.eq.s32.totalorder %v382, %v592
      %vm617 = vcmp.eq.s32.totalorder %v383, %v589
      %vm618 = vcmp.eq.s32.totalorder %v383, %v590
      %vm619 = vcmp.eq.s32.totalorder %v383, %v591
      %vm620 = vcmp.eq.s32.totalorder %v383, %v592
      %vm621 = vcmp.eq.s32.totalorder %v384, %v589
      %vm622 = vcmp.eq.s32.totalorder %v384, %v590
      %vm623 = vcmp.eq.s32.totalorder %v384, %v591
      %vm624 = vcmp.eq.s32.totalorder %v384, %v592
      %vm625 = vcmp.eq.s32.totalorder %v385, %v589
      %vm626 = vcmp.eq.s32.totalorder %v385, %v590
      %vm627 = vcmp.eq.s32.totalorder %v385, %v591
      %vm628 = vcmp.eq.s32.totalorder %v385, %v592
      %vm629 = vcmp.eq.s32.totalorder %v386, %v589
      %vm630 = vcmp.eq.s32.totalorder %v386, %v590
      %vm631 = vcmp.eq.s32.totalorder %v386, %v591
      %vm632 = vcmp.eq.s32.totalorder %v386, %v592
      %vm633 = vcmp.eq.s32.totalorder %v387, %v589
      %vm634 = vcmp.eq.s32.totalorder %v387, %v590
      %vm635 = vcmp.eq.s32.totalorder %v387, %v591
      %vm636 = vcmp.eq.s32.totalorder %v387, %v592
      %vm637 = vcmp.eq.s32.totalorder %v388, %v589
      %vm638 = vcmp.eq.s32.totalorder %v388, %v590
      %vm639 = vcmp.eq.s32.totalorder %v388, %v591
      %vm640 = vcmp.eq.s32.totalorder %v388, %v592
      %vm641 = vcmp.eq.s32.totalorder %v389, %v589
      %vm642 = vcmp.eq.s32.totalorder %v389, %v590
      %vm643 = vcmp.eq.s32.totalorder %v389, %v591
      %vm644 = vcmp.eq.s32.totalorder %v389, %v592
      %vm645 = vcmp.eq.s32.totalorder %v390, %v589
      %vm646 = vcmp.eq.s32.totalorder %v390, %v590
      %vm647 = vcmp.eq.s32.totalorder %v390, %v591
      %vm648 = vcmp.eq.s32.totalorder %v390, %v592
      %vm649 = vcmp.eq.s32.totalorder %v391, %v589
      %vm650 = vcmp.eq.s32.totalorder %v391, %v590
      %vm651 = vcmp.eq.s32.totalorder %v391, %v591
      %vm652 = vcmp.eq.s32.totalorder %v391, %v592
      %vm653 = vcmp.eq.s32.totalorder %v392, %v589
      %vm654 = vcmp.eq.s32.totalorder %v392, %v590
      %vm655 = vcmp.eq.s32.totalorder %v392, %v591
      %vm656 = vcmp.eq.s32.totalorder %v392, %v592
      %v657 = vsel %vm593, 1, 0
      %v658 = vsel %vm594, 1, 0
      %v659 = vsel %vm595, 1, 0
      %v660 = vsel %vm596, 1, 0
      %v661 = vsel %vm597, 1, 0
      %v662 = vsel %vm598, 1, 0
      %v663 = vsel %vm599, 1, 0
      %v664 = vsel %vm600, 1, 0
      %v665 = vsel %vm601, 1, 0
      %v666 = vsel %vm602, 1, 0
      %v667 = vsel %vm603, 1, 0
      %v668 = vsel %vm604, 1, 0
      %v669 = vsel %vm605, 1, 0
      %v670 = vsel %vm606, 1, 0
      %v671 = vsel %vm607, 1, 0
      %v672 = vsel %vm608, 1, 0
      %v673 = vsel %vm609, 1, 0
      %v674 = vsel %vm610, 1, 0
      %v675 = vsel %vm611, 1, 0
      %v676 = vsel %vm612, 1, 0
      %v677 = vsel %vm613, 1, 0
      %v678 = vsel %vm614, 1, 0
      %v679 = vsel %vm615, 1, 0
      %v680 = vsel %vm616, 1, 0
      %v681 = vsel %vm617, 1, 0
      %v682 = vsel %vm618, 1, 0
      %v683 = vsel %vm619, 1, 0
      %v684 = vsel %vm620, 1, 0
      %v685 = vsel %vm621, 1, 0
      %v686 = vsel %vm622, 1, 0
      %v687 = vsel %vm623, 1, 0
      %v688 = vsel %vm624, 1, 0
      %v689 = vsel %vm625, 1, 0
      %v690 = vsel %vm626, 1, 0
      %v691 = vsel %vm627, 1, 0
      %v692 = vsel %vm628, 1, 0
      %v693 = vsel %vm629, 1, 0
      %v694 = vsel %vm630, 1, 0
      %v695 = vsel %vm631, 1, 0
      %v696 = vsel %vm632, 1, 0
      %v697 = vsel %vm633, 1, 0
      %v698 = vsel %vm634, 1, 0
      %v699 = vsel %vm635, 1, 0
      %v700 = vsel %vm636, 1, 0
      %v701 = vsel %vm637, 1, 0
      %v702 = vsel %vm638, 1, 0
      %v703 = vsel %vm639, 1, 0
      %v704 = vsel %vm640, 1, 0
      %v705 = vsel %vm641, 1, 0
      %v706 = vsel %vm642, 1, 0
      %v707 = vsel %vm643, 1, 0
      %v708 = vsel %vm644, 1, 0
      %v709 = vsel %vm645, 1, 0
      %v710 = vsel %vm646, 1, 0
      %v711 = vsel %vm647, 1, 0
      %v712 = vsel %vm648, 1, 0
      %v713 = vsel %vm649, 1, 0
      %v714 = vsel %vm650, 1, 0
      %v715 = vsel %vm651, 1, 0
      %v716 = vsel %vm652, 1, 0
      %v717 = vsel %vm653, 1, 0
      %v718 = vsel %vm654, 1, 0
      %v719 = vsel %vm655, 1, 0
      %v720 = vsel %vm656, 1, 0
      %v721 = vcvt.s32.f32 %v657
      %v722 = vcvt.s32.f32 %v658
      %v723 = vcvt.s32.f32 %v659
      %v724 = vcvt.s32.f32 %v660
      %v725 = vcvt.s32.f32 %v661
      %v726 = vcvt.s32.f32 %v662
      %v727 = vcvt.s32.f32 %v663
      %v728 = vcvt.s32.f32 %v664
      %v729 = vcvt.s32.f32 %v665
      %v730 = vcvt.s32.f32 %v666
      %v731 = vcvt.s32.f32 %v667
      %v732 = vcvt.s32.f32 %v668
      %v733 = vcvt.s32.f32 %v669
      %v734 = vcvt.s32.f32 %v670
      %v735 = vcvt.s32.f32 %v671
      %v736 = vcvt.s32.f32 %v672
      %v737 = vcvt.s32.f32 %v673
      %v738 = vcvt.s32.f32 %v674
      %v739 = vcvt.s32.f32 %v675
      %v740 = vcvt.s32.f32 %v676
      %v741 = vcvt.s32.f32 %v677
      %v742 = vcvt.s32.f32 %v678
      %v743 = vcvt.s32.f32 %v679
      %v744 = vcvt.s32.f32 %v680
      %v745 = vcvt.s32.f32 %v681
      %v746 = vcvt.s32.f32 %v682
      %v747 = vcvt.s32.f32 %v683
      %v748 = vcvt.s32.f32 %v684
      %v749 = vcvt.s32.f32 %v685
      %v750 = vcvt.s32.f32 %v686
      %v751 = vcvt.s32.f32 %v687
      %v752 = vcvt.s32.f32 %v688
      %v753 = vcvt.s32.f32 %v689
      %v754 = vcvt.s32.f32 %v690
      %v755 = vcvt.s32.f32 %v691
      %v756 = vcvt.s32.f32 %v692
      %v757 = vcvt.s32.f32 %v693
      %v758 = vcvt.s32.f32 %v694
      %v759 = vcvt.s32.f32 %v695
      %v760 = vcvt.s32.f32 %v696
      %v761 = vcvt.s32.f32 %v697
      %v762 = vcvt.s32.f32 %v698
      %v763 = vcvt.s32.f32 %v699
      %v764 = vcvt.s32.f32 %v700
      %v765 = vcvt.s32.f32 %v701
      %v766 = vcvt.s32.f32 %v702
      %v767 = vcvt.s32.f32 %v703
      %v768 = vcvt.s32.f32 %v704
      %v769 = vcvt.s32.f32 %v705
      %v770 = vcvt.s32.f32 %v706
      %v771 = vcvt.s32.f32 %v707
      %v772 = vcvt.s32.f32 %v708
      %v773 = vcvt.s32.f32 %v709
      %v774 = vcvt.s32.f32 %v710
      %v775 = vcvt.s32.f32 %v711
      %v776 = vcvt.s32.f32 %v712
      %v777 = vcvt.s32.f32 %v713
      %v778 = vcvt.s32.f32 %v714
      %v779 = vcvt.s32.f32 %v715
      %v780 = vcvt.s32.f32 %v716
      %v781 = vcvt.s32.f32 %v717
      %v782 = vcvt.s32.f32 %v718
      %v783 = vcvt.s32.f32 %v719
      %v784 = vcvt.s32.f32 %v720
      %v786 = vperm.slane %v359, 0
      %v787 = vperm.slane %v359, 1
      %v788 = vperm.slane %v359, 2
      %v789 = vperm.slane %v359, 3
      %v794 = vmul.f32 %v525, %v786
      %v795 = vmul.f32 %v526, %v787
      %v796 = vmul.f32 %v527, %v788
      %v797 = vmul.f32 %v528, %v789
      %v798 = vmul.f32 %v529, %v786
      %v799 = vmul.f32 %v530, %v787
      %v800 = vmul.f32 %v531, %v788
      %v801 = vmul.f32 %v532, %v789
      %v802 = vmul.f32 %v533, %v786
      %v803 = vmul.f32 %v534, %v787
      %v804 = vmul.f32 %v535, %v788
      %v805 = vmul.f32 %v536, %v789
      %v806 = vmul.f32 %v537, %v786
      %v807 = vmul.f32 %v538, %v787
      %v808 = vmul.f32 %v539, %v788
      %v809 = vmul.f32 %v540, %v789
      %v810 = vmul.f32 %v541, %v786
      %v811 = vmul.f32 %v542, %v787
      %v812 = vmul.f32 %v543, %v788
      %v813 = vmul.f32 %v544, %v789
      %v814 = vmul.f32 %v545, %v786
      %v815 = vmul.f32 %v546, %v787
      %v816 = vmul.f32 %v547, %v788
      %v817 = vmul.f32 %v548, %v789
      %v818 = vmul.f32 %v549, %v786
      %v819 = vmul.f32 %v550, %v787
      %v820 = vmul.f32 %v551, %v788
      %v821 = vmul.f32 %v552, %v789
      %v822 = vmul.f32 %v553, %v786
      %v823 = vmul.f32 %v554, %v787
      %v824 = vmul.f32 %v555, %v788
      %v825 = vmul.f32 %v556, %v789
      %v826 = vmul.f32 %v557, %v786
      %v827 = vmul.f32 %v558, %v787
      %v828 = vmul.f32 %v559, %v788
      %v829 = vmul.f32 %v560, %v789
      %v830 = vmul.f32 %v561, %v786
      %v831 = vmul.f32 %v562, %v787
      %v832 = vmul.f32 %v563, %v788
      %v833 = vmul.f32 %v564, %v789
      %v834 = vmul.f32 %v565, %v786
      %v835 = vmul.f32 %v566, %v787
      %v836 = vmul.f32 %v567, %v788
      %v837 = vmul.f32 %v568, %v789
      %v838 = vmul.f32 %v569, %v786
      %v839 = vmul.f32 %v570, %v787
      %v840 = vmul.f32 %v571, %v788
      %v841 = vmul.f32 %v572, %v789
      %v842 = vmul.f32 %v573, %v786
      %v843 = vmul.f32 %v574, %v787
      %v844 = vmul.f32 %v575, %v788
      %v845 = vmul.f32 %v576, %v789
      %v846 = vmul.f32 %v577, %v786
      %v847 = vmul.f32 %v578, %v787
      %v848 = vmul.f32 %v579, %v788
      %v849 = vmul.f32 %v580, %v789
      %v850 = vmul.f32 %v581, %v786
      %v851 = vmul.f32 %v582, %v787
      %v852 = vmul.f32 %v583, %v788
      %v853 = vmul.f32 %v584, %v789
      %v854 = vmul.f32 %v585, %v786
      %v855 = vmul.f32 %v586, %v787
      %v856 = vmul.f32 %v587, %v788
      %v857 = vmul.f32 %v588, %v789
      %v858 = vlaneseq
      %v859 = vand.u32 %v858, 127
      %vm860 = vcmp.eq.s32.totalorder %v377, %v859
      %vm861 = vcmp.eq.s32.totalorder %v378, %v859
      %vm862 = vcmp.eq.s32.totalorder %v379, %v859
      %vm863 = vcmp.eq.s32.totalorder %v380, %v859
      %vm864 = vcmp.eq.s32.totalorder %v381, %v859
      %vm865 = vcmp.eq.s32.totalorder %v382, %v859
      %vm866 = vcmp.eq.s32.totalorder %v383, %v859
      %vm867 = vcmp.eq.s32.totalorder %v384, %v859
      %vm868 = vcmp.eq.s32.totalorder %v385, %v859
      %vm869 = vcmp.eq.s32.totalorder %v386, %v859
      %vm870 = vcmp.eq.s32.totalorder %v387, %v859
      %vm871 = vcmp.eq.s32.totalorder %v388, %v859
      %vm872 = vcmp.eq.s32.totalorder %v389, %v859
      %vm873 = vcmp.eq.s32.totalorder %v390, %v859
      %vm874 = vcmp.eq.s32.totalorder %v391, %v859
      %vm875 = vcmp.eq.s32.totalorder %v392, %v859
      %v876 = vsel %vm860, 1, 0
      %v877 = vsel %vm861, 1, 0
      %v878 = vsel %vm862, 1, 0
      %v879 = vsel %vm863, 1, 0
      %v880 = vsel %vm864, 1, 0
      %v881 = vsel %vm865, 1, 0
      %v882 = vsel %vm866, 1, 0
      %v883 = vsel %vm867, 1, 0
      %v884 = vsel %vm868, 1, 0
      %v885 = vsel %vm869, 1, 0
      %v886 = vsel %vm870, 1, 0
      %v887 = vsel %vm871, 1, 0
      %v888 = vsel %vm872, 1, 0
      %v889 = vsel %vm873, 1, 0
      %v890 = vsel %vm874, 1, 0
      %v891 = vsel %vm875, 1, 0
      %v892 = vcvt.s32.f32 %v876
      %v893 = vcvt.s32.f32 %v877
      %v894 = vcvt.s32.f32 %v878
      %v895 = vcvt.s32.f32 %v879
      %v896 = vcvt.s32.f32 %v880
      %v897 = vcvt.s32.f32 %v881
      %v898 = vcvt.s32.f32 %v882
      %v899 = vcvt.s32.f32 %v883
      %v900 = vcvt.s32.f32 %v884
      %v901 = vcvt.s32.f32 %v885
      %v902 = vcvt.s32.f32 %v886
      %v903 = vcvt.s32.f32 %v887
      %v904 = vcvt.s32.f32 %v888
      %v905 = vcvt.s32.f32 %v889
      %v906 = vcvt.s32.f32 %v890
      %v907 = vcvt.s32.f32 %v891
      %908 = vmatpush.xpose.msra.mxu0 %v781
      %909 = vmatpush.xpose.msra.mxu0 %v777
      %910 = vmatpush.xpose.msra.mxu0 %v773
      %911 = vmatpush.xpose.msra.mxu0 %v769
      %912 = vmatpush.xpose.msra.mxu0 %v765
      %913 = vmatpush.xpose.msra.mxu0 %v761
      %914 = vmatpush.xpose.msra.mxu0 %v757
      %915 = vmatpush.xpose.msra.mxu0 %v753
      %916 = vmatpush.xpose.msra.mxu0 %v749
      %917 = vmatpush.xpose.msra.mxu0 %v745
      %918 = vmatpush.xpose.msra.mxu0 %v741
      %919 = vmatpush.xpose.msra.mxu0 %v737
      %920 = vmatpush.xpose.msra.mxu0 %v733
      %921 = vmatpush.xpose.msra.mxu0 %v729
      %922 = vmatpush.xpose.msra.mxu0 %v725
      %923 = vmatpush.xpose.msra.mxu0 %v721
      %924 = vmatmul.f32.gmra.mxu0 %v794
      %v925 = vpop.f32.mrf.mxu0
      %v926 = vadd.f32 %v892, %v925
      %927 = vmatmul.f32.gmra.mxu0 %v798
      %v928 = vpop.f32.mrf.mxu0
      %v929 = vadd.f32 %v893, %v928
      %930 = vmatmul.f32.gmra.mxu0 %v802
      %v931 = vpop.f32.mrf.mxu0
      %v932 = vadd.f32 %v894, %v931
      %933 = vmatmul.f32.gmra.mxu0 %v806
      %v934 = vpop.f32.mrf.mxu0
      %v935 = vadd.f32 %v895, %v934
      %936 = vmatmul.f32.gmra.mxu0 %v810
      %v937 = vpop.f32.mrf.mxu0
      %v938 = vadd.f32 %v896, %v937
      %939 = vmatmul.f32.gmra.mxu0 %v814
      %v940 = vpop.f32.mrf.mxu0
      %v941 = vadd.f32 %v897, %v940
      %942 = vmatmul.f32.gmra.mxu0 %v818
      %v943 = vpop.f32.mrf.mxu0
      %v944 = vadd.f32 %v898, %v943
      %945 = vmatmul.f32.gmra.mxu0 %v822
      %v946 = vpop.f32.mrf.mxu0
      %v947 = vadd.f32 %v899, %v946
      %948 = vmatmul.f32.gmra.mxu0 %v826
      %v949 = vpop.f32.mrf.mxu0
      %v950 = vadd.f32 %v900, %v949
      %951 = vmatmul.f32.gmra.mxu0 %v830
      %v952 = vpop.f32.mrf.mxu0
      %v953 = vadd.f32 %v901, %v952
      %954 = vmatmul.f32.gmra.mxu0 %v834
      %v955 = vpop.f32.mrf.mxu0
      %v956 = vadd.f32 %v902, %v955
      %957 = vmatmul.f32.gmra.mxu0 %v838
      %v958 = vpop.f32.mrf.mxu0
      %v959 = vadd.f32 %v903, %v958
      %960 = vmatmul.f32.gmra.mxu0 %v842
      %v961 = vpop.f32.mrf.mxu0
      %v962 = vadd.f32 %v904, %v961
      %963 = vmatmul.f32.gmra.mxu0 %v846
      %v964 = vpop.f32.mrf.mxu0
      %v965 = vadd.f32 %v905, %v964
      %966 = vmatmul.f32.gmra.mxu0 %v850
      %v967 = vpop.f32.mrf.mxu0
      %v968 = vadd.f32 %v906, %v967
      %969 = vmatmul.f32.gmra.mxu0 %v854
      %v970 = vpop.f32.mrf.mxu0
      %v971 = vadd.f32 %v907, %v970
      %972 = vdwg.mxu0
      %973 = vmatpush.xpose.msra.mxu0 %v782
      %974 = vmatpush.xpose.msra.mxu0 %v778
      %975 = vmatpush.xpose.msra.mxu0 %v774
      %976 = vmatpush.xpose.msra.mxu0 %v770
      %977 = vmatpush.xpose.msra.mxu0 %v766
      %978 = vmatpush.xpose.msra.mxu0 %v762
      %979 = vmatpush.xpose.msra.mxu0 %v758
      %980 = vmatpush.xpose.msra.mxu0 %v754
      %981 = vmatpush.xpose.msra.mxu0 %v750
      %982 = vmatpush.xpose.msra.mxu0 %v746
      %983 = vmatpush.xpose.msra.mxu0 %v742
      %984 = vmatpush.xpose.msra.mxu0 %v738
      %985 = vmatpush.xpose.msra.mxu0 %v734
      %986 = vmatpush.xpose.msra.mxu0 %v730
      %987 = vmatpush.xpose.msra.mxu0 %v726
      %988 = vmatpush.xpose.msra.mxu0 %v722
      %989 = vmatmul.f32.gmra.mxu0 %v795
      %v990 = vpop.f32.mrf.mxu0
      %v991 = vadd.f32 %v926, %v990
      %992 = vmatmul.f32.gmra.mxu0 %v799
      %v993 = vpop.f32.mrf.mxu0
      %v994 = vadd.f32 %v929, %v993
      %995 = vmatmul.f32.gmra.mxu0 %v803
      %v996 = vpop.f32.mrf.mxu0
      %v997 = vadd.f32 %v932, %v996
      %998 = vmatmul.f32.gmra.mxu0 %v807
      %v999 = vpop.f32.mrf.mxu0
      %v1000 = vadd.f32 %v935, %v999
      %1001 = vmatmul.f32.gmra.mxu0 %v811
      %v1002 = vpop.f32.mrf.mxu0
      %v1003 = vadd.f32 %v938, %v1002
      %1004 = vmatmul.f32.gmra.mxu0 %v815
      %v1005 = vpop.f32.mrf.mxu0
      %v1006 = vadd.f32 %v941, %v1005
      %1007 = vmatmul.f32.gmra.mxu0 %v819
      %v1008 = vpop.f32.mrf.mxu0
      %v1009 = vadd.f32 %v944, %v1008
      %1010 = vmatmul.f32.gmra.mxu0 %v823
      %v1011 = vpop.f32.mrf.mxu0
      %v1012 = vadd.f32 %v947, %v1011
      %1013 = vmatmul.f32.gmra.mxu0 %v827
      %v1014 = vpop.f32.mrf.mxu0
      %v1015 = vadd.f32 %v950, %v1014
      %1016 = vmatmul.f32.gmra.mxu0 %v831
      %v1017 = vpop.f32.mrf.mxu0
      %v1018 = vadd.f32 %v953, %v1017
      %1019 = vmatmul.f32.gmra.mxu0 %v835
      %v1020 = vpop.f32.mrf.mxu0
      %v1021 = vadd.f32 %v956, %v1020
      %1022 = vmatmul.f32.gmra.mxu0 %v839
      %v1023 = vpop.f32.mrf.mxu0
      %v1024 = vadd.f32 %v959, %v1023
      %1025 = vmatmul.f32.gmra.mxu0 %v843
      %v1026 = vpop.f32.mrf.mxu0
      %v1027 = vadd.f32 %v962, %v1026
      %1028 = vmatmul.f32.gmra.mxu0 %v847
      %v1029 = vpop.f32.mrf.mxu0
      %v1030 = vadd.f32 %v965, %v1029
      %1031 = vmatmul.f32.gmra.mxu0 %v851
      %v1032 = vpop.f32.mrf.mxu0
      %v1033 = vadd.f32 %v968, %v1032
      %1034 = vmatmul.f32.gmra.mxu0 %v855
      %v1035 = vpop.f32.mrf.mxu0
      %v1036 = vadd.f32 %v971, %v1035
      %1037 = vdwg.mxu0
      %1038 = vmatpush.xpose.msra.mxu0 %v783
      %1039 = vmatpush.xpose.msra.mxu0 %v779
      %1040 = vmatpush.xpose.msra.mxu0 %v775
      %1041 = vmatpush.xpose.msra.mxu0 %v771
      %1042 = vmatpush.xpose.msra.mxu0 %v767
      %1043 = vmatpush.xpose.msra.mxu0 %v763
      %1044 = vmatpush.xpose.msra.mxu0 %v759
      %1045 = vmatpush.xpose.msra.mxu0 %v755
      %1046 = vmatpush.xpose.msra.mxu0 %v751
      %1047 = vmatpush.xpose.msra.mxu0 %v747
      %1048 = vmatpush.xpose.msra.mxu0 %v743
      %1049 = vmatpush.xpose.msra.mxu0 %v739
      %1050 = vmatpush.xpose.msra.mxu0 %v735
      %1051 = vmatpush.xpose.msra.mxu0 %v731
      %1052 = vmatpush.xpose.msra.mxu0 %v727
      %1053 = vmatpush.xpose.msra.mxu0 %v723
      %1054 = vmatmul.f32.gmra.mxu0 %v796
      %v1055 = vpop.f32.mrf.mxu0
      %v1056 = vadd.f32 %v991, %v1055
      %1057 = vmatmul.f32.gmra.mxu0 %v800
      %v1058 = vpop.f32.mrf.mxu0
      %v1059 = vadd.f32 %v994, %v1058
      %1060 = vmatmul.f32.gmra.mxu0 %v804
      %v1061 = vpop.f32.mrf.mxu0
      %v1062 = vadd.f32 %v997, %v1061
      %1063 = vmatmul.f32.gmra.mxu0 %v808
      %v1064 = vpop.f32.mrf.mxu0
      %v1065 = vadd.f32 %v1000, %v1064
      %1066 = vmatmul.f32.gmra.mxu0 %v812
      %v1067 = vpop.f32.mrf.mxu0
      %v1068 = vadd.f32 %v1003, %v1067
      %1069 = vmatmul.f32.gmra.mxu0 %v816
      %v1070 = vpop.f32.mrf.mxu0
      %v1071 = vadd.f32 %v1006, %v1070
      %1072 = vmatmul.f32.gmra.mxu0 %v820
      %v1073 = vpop.f32.mrf.mxu0
      %v1074 = vadd.f32 %v1009, %v1073
      %1075 = vmatmul.f32.gmra.mxu0 %v824
      %v1076 = vpop.f32.mrf.mxu0
      %v1077 = vadd.f32 %v1012, %v1076
      %1078 = vmatmul.f32.gmra.mxu0 %v828
      %v1079 = vpop.f32.mrf.mxu0
      %v1080 = vadd.f32 %v1015, %v1079
      %1081 = vmatmul.f32.gmra.mxu0 %v832
      %v1082 = vpop.f32.mrf.mxu0
      %v1083 = vadd.f32 %v1018, %v1082
      %1084 = vmatmul.f32.gmra.mxu0 %v836
      %v1085 = vpop.f32.mrf.mxu0
      %v1086 = vadd.f32 %v1021, %v1085
      %1087 = vmatmul.f32.gmra.mxu0 %v840
      %v1088 = vpop.f32.mrf.mxu0
      %v1089 = vadd.f32 %v1024, %v1088
      %1090 = vmatmul.f32.gmra.mxu0 %v844
      %v1091 = vpop.f32.mrf.mxu0
      %v1092 = vadd.f32 %v1027, %v1091
      %1093 = vmatmul.f32.gmra.mxu0 %v848
      %v1094 = vpop.f32.mrf.mxu0
      %v1095 = vadd.f32 %v1030, %v1094
      %1096 = vmatmul.f32.gmra.mxu0 %v852
      %v1097 = vpop.f32.mrf.mxu0
      %v1098 = vadd.f32 %v1033, %v1097
      %1099 = vmatmul.f32.gmra.mxu0 %v856
      %v1100 = vpop.f32.mrf.mxu0
      %v1101 = vadd.f32 %v1036, %v1100
      %1102 = vdwg.mxu0
      %1103 = vmatpush.xpose.msra.mxu0 %v784
      %1104 = vmatpush.xpose.msra.mxu0 %v780
      %1105 = vmatpush.xpose.msra.mxu0 %v776
      %1106 = vmatpush.xpose.msra.mxu0 %v772
      %1107 = vmatpush.xpose.msra.mxu0 %v768
      %1108 = vmatpush.xpose.msra.mxu0 %v764
      %1109 = vmatpush.xpose.msra.mxu0 %v760
      %1110 = vmatpush.xpose.msra.mxu0 %v756
      %1111 = vmatpush.xpose.msra.mxu0 %v752
      %1112 = vmatpush.xpose.msra.mxu0 %v748
      %1113 = vmatpush.xpose.msra.mxu0 %v744
      %1114 = vmatpush.xpose.msra.mxu0 %v740
      %1115 = vmatpush.xpose.msra.mxu0 %v736
      %1116 = vmatpush.xpose.msra.mxu0 %v732
      %1117 = vmatpush.xpose.msra.mxu0 %v728
      %1118 = vmatpush.xpose.msra.mxu0 %v724
      %1119 = vmatmul.f32.gmra.mxu0 %v797
      %v1120 = vpop.f32.mrf.mxu0
      %v1121 = vadd.f32 %v1056, %v1120
      %1122 = vmatmul.f32.gmra.mxu0 %v801
      %v1123 = vpop.f32.mrf.mxu0
      %v1124 = vadd.f32 %v1059, %v1123
      %1125 = vmatmul.f32.gmra.mxu0 %v805
      %v1126 = vpop.f32.mrf.mxu0
      %v1127 = vadd.f32 %v1062, %v1126
      %1128 = vmatmul.f32.gmra.mxu0 %v809
      %v1129 = vpop.f32.mrf.mxu0
      %v1130 = vadd.f32 %v1065, %v1129
      %1131 = vmatmul.f32.gmra.mxu0 %v813
      %v1132 = vpop.f32.mrf.mxu0
      %v1133 = vadd.f32 %v1068, %v1132
      %1134 = vmatmul.f32.gmra.mxu0 %v817
      %v1135 = vpop.f32.mrf.mxu0
      %v1136 = vadd.f32 %v1071, %v1135
      %1137 = vmatmul.f32.gmra.mxu0 %v821
      %v1138 = vpop.f32.mrf.mxu0
      %v1139 = vadd.f32 %v1074, %v1138
      %1140 = vmatmul.f32.gmra.mxu0 %v825
      %v1141 = vpop.f32.mrf.mxu0
      %v1142 = vadd.f32 %v1077, %v1141
      %1143 = vmatmul.f32.gmra.mxu0 %v829
      %v1144 = vpop.f32.mrf.mxu0
      %v1145 = vadd.f32 %v1080, %v1144
      %1146 = vmatmul.f32.gmra.mxu0 %v833
      %v1147 = vpop.f32.mrf.mxu0
      %v1148 = vadd.f32 %v1083, %v1147
      %1149 = vmatmul.f32.gmra.mxu0 %v837
      %v1150 = vpop.f32.mrf.mxu0
      %v1151 = vadd.f32 %v1086, %v1150
      %1152 = vmatmul.f32.gmra.mxu0 %v841
      %v1153 = vpop.f32.mrf.mxu0
      %v1154 = vadd.f32 %v1089, %v1153
      %1155 = vmatmul.f32.gmra.mxu0 %v845
      %v1156 = vpop.f32.mrf.mxu0
      %v1157 = vadd.f32 %v1092, %v1156
      %1158 = vmatmul.f32.gmra.mxu0 %v849
      %v1159 = vpop.f32.mrf.mxu0
      %v1160 = vadd.f32 %v1095, %v1159
      %1161 = vmatmul.f32.gmra.mxu0 %v853
      %v1162 = vpop.f32.mrf.mxu0
      %v1163 = vadd.f32 %v1098, %v1162
      %1164 = vmatmul.f32.gmra.mxu0 %v857
      %v1165 = vpop.f32.mrf.mxu0
      %v1166 = vadd.f32 %v1101, %v1165
      %1167 = vdwg.mxu0
      %1168 = vadd.xlane.f32.xlu0 %v1121
      %v1169 = vpop.xlane.xlu0 %1168
      %1170 = vadd.xlane.f32.xlu0 %v1124
      %v1171 = vpop.xlane.xlu0 %1170
      %1172 = vadd.xlane.f32.xlu0 %v1127
      %v1173 = vpop.xlane.xlu0 %1172
      %1174 = vadd.xlane.f32.xlu0 %v1130
      %v1175 = vpop.xlane.xlu0 %1174
      %1176 = vadd.xlane.f32.xlu0 %v1133
      %v1177 = vpop.xlane.xlu0 %1176
      %1178 = vadd.xlane.f32.xlu0 %v1136
      %v1179 = vpop.xlane.xlu0 %1178
      %1180 = vadd.xlane.f32.xlu0 %v1139
      %v1181 = vpop.xlane.xlu0 %1180
      %1182 = vadd.xlane.f32.xlu0 %v1142
      %v1183 = vpop.xlane.xlu0 %1182
      %1184 = vadd.xlane.f32.xlu0 %v1145
      %v1185 = vpop.xlane.xlu0 %1184
      %1186 = vadd.xlane.f32.xlu0 %v1148
      %v1187 = vpop.xlane.xlu0 %1186
      %1188 = vadd.xlane.f32.xlu0 %v1151
      %v1189 = vpop.xlane.xlu0 %1188
      %1190 = vadd.xlane.f32.xlu0 %v1154
      %v1191 = vpop.xlane.xlu0 %1190
      %1192 = vadd.xlane.f32.xlu0 %v1157
      %v1193 = vpop.xlane.xlu0 %1192
      %1194 = vadd.xlane.f32.xlu0 %v1160
      %v1195 = vpop.xlane.xlu0 %1194
      %1196 = vadd.xlane.f32.xlu0 %v1163
      %v1197 = vpop.xlane.xlu0 %1196
      %1198 = vadd.xlane.f32.xlu0 %v1166
      %v1199 = vpop.xlane.xlu0 %1198
      %1200 = vmatpush.xpose.msra.mxu0 %v1166
      %1201 = vmatpush.xpose.msra.mxu0 %v1163
      %1202 = vmatpush.xpose.msra.mxu0 %v1160
      %1203 = vmatpush.xpose.msra.mxu0 %v1157
      %1204 = vmatpush.xpose.msra.mxu0 %v1154
      %1205 = vmatpush.xpose.msra.mxu0 %v1151
      %1206 = vmatpush.xpose.msra.mxu0 %v1148
      %1207 = vmatpush.xpose.msra.mxu0 %v1145
      %1208 = vmatpush.xpose.msra.mxu0 %v1142
      %1209 = vmatpush.xpose.msra.mxu0 %v1139
      %1210 = vmatpush.xpose.msra.mxu0 %v1136
      %1211 = vmatpush.xpose.msra.mxu0 %v1133
      %1212 = vmatpush.xpose.msra.mxu0 %v1130
      %1213 = vmatpush.xpose.msra.mxu0 %v1127
      %1214 = vmatpush.xpose.msra.mxu0 %v1124
      %1215 = vmatpush.xpose.msra.mxu0 %v1121
      %1216 = vmatmul.f32.gmra.mxu0 1.0
      %v1217 = vpop.f32.mrf.mxu0
      %v1218 = vadd.f32 0.0, %v1217
      %1219 = vdwg.mxu0
      %v1220 = vrsqrt.pop %v1169
      %v1221 = vmul.f32 %v1220, %v1169
      %v1222 = vmul.f32 %v1221, %v1220
      %v1223 = vmul.f32 0.5, %v1222
      %v1224 = vsub.f32 1.5, %v1223
      %v1225 = vmul.f32 %v1220, %v1224
      %vm1226 = vweird.f32 %v1169
      %vm1227 = vweird.f32 %v1220
      %vm1228 = vmor %vm1226, %vm1227
      %v1229 = vsel %vm1228, %v1220, %v1225
      %v1230 = vrsqrt.pop %v1171
      %v1231 = vmul.f32 %v1230, %v1171
      %v1232 = vmul.f32 %v1231, %v1230
      %v1233 = vmul.f32 0.5, %v1232
      %v1234 = vsub.f32 1.5, %v1233
      %v1235 = vmul.f32 %v1230, %v1234
      %vm1236 = vweird.f32 %v1171
      %vm1237 = vweird.f32 %v1230
      %vm1238 = vmor %vm1236, %vm1237
      %v1239 = vsel %vm1238, %v1230, %v1235
      %v1240 = vrsqrt.pop %v1173
      %v1241 = vmul.f32 %v1240, %v1173
      %v1242 = vmul.f32 %v1241, %v1240
      %v1243 = vmul.f32 0.5, %v1242
      %v1244 = vsub.f32 1.5, %v1243
      %v1245 = vmul.f32 %v1240, %v1244
      %vm1246 = vweird.f32 %v1173
      %vm1247 = vweird.f32 %v1240
      %vm1248 = vmor %vm1246, %vm1247
      %v1249 = vsel %vm1248, %v1240, %v1245
      %v1250 = vrsqrt.pop %v1175
      %v1251 = vmul.f32 %v1250, %v1175
      %v1252 = vmul.f32 %v1251, %v1250
      %v1253 = vmul.f32 0.5, %v1252
      %v1254 = vsub.f32 1.5, %v1253
      %v1255 = vmul.f32 %v1250, %v1254
      %vm1256 = vweird.f32 %v1175
      %vm1257 = vweird.f32 %v1250
      %vm1258 = vmor %vm1256, %vm1257
      %v1259 = vsel %vm1258, %v1250, %v1255
      %v1260 = vrsqrt.pop %v1177
      %v1261 = vmul.f32 %v1260, %v1177
      %v1262 = vmul.f32 %v1261, %v1260
      %v1263 = vmul.f32 0.5, %v1262
      %v1264 = vsub.f32 1.5, %v1263
      %v1265 = vmul.f32 %v1260, %v1264
      %vm1266 = vweird.f32 %v1177
      %vm1267 = vweird.f32 %v1260
      %vm1268 = vmor %vm1266, %vm1267
      %v1269 = vsel %vm1268, %v1260, %v1265
      %v1270 = vrsqrt.pop %v1179
      %v1271 = vmul.f32 %v1270, %v1179
      %v1272 = vmul.f32 %v1271, %v1270
      %v1273 = vmul.f32 0.5, %v1272
      %v1274 = vsub.f32 1.5, %v1273
      %v1275 = vmul.f32 %v1270, %v1274
      %vm1276 = vweird.f32 %v1179
      %vm1277 = vweird.f32 %v1270
      %vm1278 = vmor %vm1276, %vm1277
      %v1279 = vsel %vm1278, %v1270, %v1275
      %v1280 = vrsqrt.pop %v1181
      %v1281 = vmul.f32 %v1280, %v1181
      %v1282 = vmul.f32 %v1281, %v1280
      %v1283 = vmul.f32 0.5, %v1282
      %v1284 = vsub.f32 1.5, %v1283
      %v1285 = vmul.f32 %v1280, %v1284
      %vm1286 = vweird.f32 %v1181
      %vm1287 = vweird.f32 %v1280
      %vm1288 = vmor %vm1286, %vm1287
      %v1289 = vsel %vm1288, %v1280, %v1285
      %v1290 = vrsqrt.pop %v1183
      %v1291 = vmul.f32 %v1290, %v1183
      %v1292 = vmul.f32 %v1291, %v1290
      %v1293 = vmul.f32 0.5, %v1292
      %v1294 = vsub.f32 1.5, %v1293
      %v1295 = vmul.f32 %v1290, %v1294
      %vm1296 = vweird.f32 %v1183
      %vm1297 = vweird.f32 %v1290
      %vm1298 = vmor %vm1296, %vm1297
      %v1299 = vsel %vm1298, %v1290, %v1295
      %v1300 = vrsqrt.pop %v1185
      %v1301 = vmul.f32 %v1300, %v1185
      %v1302 = vmul.f32 %v1301, %v1300
      %v1303 = vmul.f32 0.5, %v1302
      %v1304 = vsub.f32 1.5, %v1303
      %v1305 = vmul.f32 %v1300, %v1304
      %vm1306 = vweird.f32 %v1185
      %vm1307 = vweird.f32 %v1300
      %vm1308 = vmor %vm1306, %vm1307
      %v1309 = vsel %vm1308, %v1300, %v1305
      %v1310 = vrsqrt.pop %v1187
      %v1311 = vmul.f32 %v1310, %v1187
      %v1312 = vmul.f32 %v1311, %v1310
      %v1313 = vmul.f32 0.5, %v1312
      %v1314 = vsub.f32 1.5, %v1313
      %v1315 = vmul.f32 %v1310, %v1314
      %vm1316 = vweird.f32 %v1187
      %vm1317 = vweird.f32 %v1310
      %vm1318 = vmor %vm1316, %vm1317
      %v1319 = vsel %vm1318, %v1310, %v1315
      %v1320 = vrsqrt.pop %v1189
      %v1321 = vmul.f32 %v1320, %v1189
      %v1322 = vmul.f32 %v1321, %v1320
      %v1323 = vmul.f32 0.5, %v1322
      %v1324 = vsub.f32 1.5, %v1323
      %v1325 = vmul.f32 %v1320, %v1324
      %vm1326 = vweird.f32 %v1189
      %vm1327 = vweird.f32 %v1320
      %vm1328 = vmor %vm1326, %vm1327
      %v1329 = vsel %vm1328, %v1320, %v1325
      %v1330 = vrsqrt.pop %v1191
      %v1331 = vmul.f32 %v1330, %v1191
      %v1332 = vmul.f32 %v1331, %v1330
      %v1333 = vmul.f32 0.5, %v1332
      %v1334 = vsub.f32 1.5, %v1333
      %v1335 = vmul.f32 %v1330, %v1334
      %vm1336 = vweird.f32 %v1191
      %vm1337 = vweird.f32 %v1330
      %vm1338 = vmor %vm1336, %vm1337
      %v1339 = vsel %vm1338, %v1330, %v1335
      %v1340 = vrsqrt.pop %v1193
      %v1341 = vmul.f32 %v1340, %v1193
      %v1342 = vmul.f32 %v1341, %v1340
      %v1343 = vmul.f32 0.5, %v1342
      %v1344 = vsub.f32 1.5, %v1343
      %v1345 = vmul.f32 %v1340, %v1344
      %vm1346 = vweird.f32 %v1193
      %vm1347 = vweird.f32 %v1340
      %vm1348 = vmor %vm1346, %vm1347
      %v1349 = vsel %vm1348, %v1340, %v1345
      %v1350 = vrsqrt.pop %v1195
      %v1351 = vmul.f32 %v1350, %v1195
      %v1352 = vmul.f32 %v1351, %v1350
      %v1353 = vmul.f32 0.5, %v1352
      %v1354 = vsub.f32 1.5, %v1353
      %v1355 = vmul.f32 %v1350, %v1354
      %vm1356 = vweird.f32 %v1195
      %vm1357 = vweird.f32 %v1350
      %vm1358 = vmor %vm1356, %vm1357
      %v1359 = vsel %vm1358, %v1350, %v1355
      %v1360 = vrsqrt.pop %v1197
      %v1361 = vmul.f32 %v1360, %v1197
      %v1362 = vmul.f32 %v1361, %v1360
      %v1363 = vmul.f32 0.5, %v1362
      %v1364 = vsub.f32 1.5, %v1363
      %v1365 = vmul.f32 %v1360, %v1364
      %vm1366 = vweird.f32 %v1197
      %vm1367 = vweird.f32 %v1360
      %vm1368 = vmor %vm1366, %vm1367
      %v1369 = vsel %vm1368, %v1360, %v1365
      %v1370 = vrsqrt.pop %v1199
      %v1371 = vmul.f32 %v1370, %v1199
      %v1372 = vmul.f32 %v1371, %v1370
      %v1373 = vmul.f32 0.5, %v1372
      %v1374 = vsub.f32 1.5, %v1373
      %v1375 = vmul.f32 %v1370, %v1374
      %vm1376 = vweird.f32 %v1199
      %vm1377 = vweird.f32 %v1370
      %vm1378 = vmor %vm1376, %vm1377
      %v1379 = vsel %vm1378, %v1370, %v1375
      %v1380 = vmul.f32 %v1229, %v1121
      %v1381 = vmul.f32 %v1239, %v1124
      %v1382 = vmul.f32 %v1249, %v1127
      %v1383 = vmul.f32 %v1259, %v1130
      %v1384 = vmul.f32 %v1269, %v1133
      %v1385 = vmul.f32 %v1279, %v1136
      %v1386 = vmul.f32 %v1289, %v1139
      %v1387 = vmul.f32 %v1299, %v1142
      %v1388 = vmul.f32 %v1309, %v1145
      %v1389 = vmul.f32 %v1319, %v1148
      %v1390 = vmul.f32 %v1329, %v1151
      %v1391 = vmul.f32 %v1339, %v1154
      %v1392 = vmul.f32 %v1349, %v1157
      %v1393 = vmul.f32 %v1359, %v1160
      %v1394 = vmul.f32 %v1369, %v1163
      %v1395 = vmul.f32 %v1379, %v1166
      %v1396 = vrsqrt.pop %v1218
      %v1397 = vmul.f32 %v1396, %v1218
      %v1398 = vmul.f32 %v1397, %v1396
      %v1399 = vmul.f32 0.5, %v1398
      %v1400 = vsub.f32 1.5, %v1399
      %v1401 = vmul.f32 %v1396, %v1400
      %vm1402 = vweird.f32 %v1218
      %vm1403 = vweird.f32 %v1396
      %vm1404 = vmor %vm1402, %vm1403
      %v1405 = vsel %vm1404, %v1396, %v1401
      %v1406 = vperm.slane %v1405, 0
      %v1407 = vmul.f32 %v1380, %v1406
      %v1408 = vmul.f32 %v1381, %v1406
      %v1409 = vmul.f32 %v1382, %v1406
      %v1410 = vmul.f32 %v1383, %v1406
      %v1411 = vmul.f32 %v1384, %v1406
      %v1412 = vmul.f32 %v1385, %v1406
      %v1413 = vmul.f32 %v1386, %v1406
      %v1414 = vmul.f32 %v1387, %v1406
      %v1415 = vmul.f32 %v1388, %v1406
      %v1416 = vmul.f32 %v1389, %v1406
      %v1417 = vmul.f32 %v1390, %v1406
      %v1418 = vmul.f32 %v1391, %v1406
      %v1419 = vmul.f32 %v1392, %v1406
      %v1420 = vmul.f32 %v1393, %v1406
      %v1421 = vmul.f32 %v1394, %v1406
      %v1422 = vmul.f32 %v1395, %v1406
      %v1423 = vld [vmem:[%s4] sm:$0xff]
      %v1424 = vld [vmem:[%s4 + $0x8] sm:$0xff]
      %vm1425 = vcmask 130048
      %v1427 = vsel %vm1425, %v360, 0
      %v1430 = vsel %vm1425, %v361, 0
      %v1433 = vsel %vm1425, %v362, 0
      %v1436 = vsel %vm1425, %v363, 0
      %v1439 = vsel %vm1425, %v364, 0
      %v1442 = vsel %vm1425, %v365, 0
      %v1445 = vsel %vm1425, %v366, 0
      %v1448 = vsel %vm1425, %v367, 0
      %v1451 = vsel %vm1425, %v368, 0
      %v1454 = vsel %vm1425, %v369, 0
      %v1457 = vsel %vm1425, %v370, 0
      %v1460 = vsel %vm1425, %v371, 0
      %v1463 = vsel %vm1425, %v372, 0
      %v1466 = vsel %vm1425, %v373, 0
      %v1469 = vsel %vm1425, %v374, 0
      %v1472 = vsel %vm1425, %v375, 0
      %1474 = vmatpush.msra.mxu0 0.0
      %1475 = vmatpush.msra.mxu0 0.0
      %1476 = vmatpush.msra.mxu0 0.0
      %1477 = vmatpush.msra.mxu0 0.0
      %1478 = vmatpush.msra.mxu0 0.0
      %1479 = vmatpush.msra.mxu0 0.0
      %1480 = vmatpush.msra.mxu0 0.0
      %1481 = vmatpush.msra.mxu0 0.0
      %1482 = vmatpush.msra.mxu0 0.0
      %1483 = vmatpush.msra.mxu0 0.0
      %1484 = vmatpush.msra.mxu0 0.0
      %1485 = vmatpush.msra.mxu0 0.0
      %1486 = vmatpush.msra.mxu0 0.0
      %1487 = vmatpush.msra.mxu0 0.0
      %1488 = vmatpush.msra.mxu0 %v1424
      %1489 = vmatpush.msra.mxu0 %v1423
      %1490 = vmatmul.f32.gmra.mxu0 %v1427
      %v1491 = vpop.f32.mrf.mxu0
      %v1492 = vadd.f32 0.0, %v1491
      %1493 = vmatmul.f32.gmra.mxu0 %v1430
      %v1494 = vpop.f32.mrf.mxu0
      %v1495 = vadd.f32 0.0, %v1494
      %1496 = vmatmul.f32.gmra.mxu0 %v1433
      %v1497 = vpop.f32.mrf.mxu0
      %v1498 = vadd.f32 0.0, %v1497
      %1499 = vmatmul.f32.gmra.mxu0 %v1436
      %v1500 = vpop.f32.mrf.mxu0
      %v1501 = vadd.f32 0.0, %v1500
      %1502 = vmatmul.f32.gmra.mxu0 %v1439
      %v1503 = vpop.f32.mrf.mxu0
      %v1504 = vadd.f32 0.0, %v1503
      %1505 = vmatmul.f32.gmra.mxu0 %v1442
      %v1506 = vpop.f32.mrf.mxu0
      %v1507 = vadd.f32 0.0, %v1506
      %1508 = vmatmul.f32.gmra.mxu0 %v1445
      %v1509 = vpop.f32.mrf.mxu0
      %v1510 = vadd.f32 0.0, %v1509
      %1511 = vmatmul.f32.gmra.mxu0 %v1448
      %v1512 = vpop.f32.mrf.mxu0
      %v1513 = vadd.f32 0.0, %v1512
      %1514 = vmatmul.f32.gmra.mxu0 %v1451
      %v1515 = vpop.f32.mrf.mxu0
      %v1516 = vadd.f32 0.0, %v1515
      %1517 = vmatmul.f32.gmra.mxu0 %v1454
      %v1518 = vpop.f32.mrf.mxu0
      %v1519 = vadd.f32 0.0, %v1518
      %1520 = vmatmul.f32.gmra.mxu0 %v1457
      %v1521 = vpop.f32.mrf.mxu0
      %v1522 = vadd.f32 0.0, %v1521
      %1523 = vmatmul.f32.gmra.mxu0 %v1460
      %v1524 = vpop.f32.mrf.mxu0
      %v1525 = vadd.f32 0.0, %v1524
      %1526 = vmatmul.f32.gmra.mxu0 %v1463
      %v1527 = vpop.f32.mrf.mxu0
      %v1528 = vadd.f32 0.0, %v1527
      %1529 = vmatmul.f32.gmra.mxu0 %v1466
      %v1530 = vpop.f32.mrf.mxu0
      %v1531 = vadd.f32 0.0, %v1530
      %1532 = vmatmul.f32.gmra.mxu0 %v1469
      %v1533 = vpop.f32.mrf.mxu0
      %v1534 = vadd.f32 0.0, %v1533
      %1535 = vmatmul.f32.gmra.mxu0 %v1472
      %v1536 = vpop.f32.mrf.mxu0
      %v1537 = vadd.f32 0.0, %v1536
      %1538 = vdwg.mxu0
      %v1539 = vld [vmem:[%s5] sm:$0x1]
      %v1541 = vperm.slane %v1539, 0
      %1543 = vmatpush.msra.mxu0 %v1537
      %1544 = vmatpush.msra.mxu0 %v1534
      %1545 = vmatpush.msra.mxu0 %v1531
      %1546 = vmatpush.msra.mxu0 %v1528
      %1547 = vmatpush.msra.mxu0 %v1525
      %1548 = vmatpush.msra.mxu0 %v1522
      %1549 = vmatpush.msra.mxu0 %v1519
      %1550 = vmatpush.msra.mxu0 %v1516
      %1551 = vmatpush.msra.mxu0 %v1513
      %1552 = vmatpush.msra.mxu0 %v1510
      %1553 = vmatpush.msra.mxu0 %v1507
      %1554 = vmatpush.msra.mxu0 %v1504
      %1555 = vmatpush.msra.mxu0 %v1501
      %1556 = vmatpush.msra.mxu0 %v1498
      %1557 = vmatpush.msra.mxu0 %v1495
      %1558 = vmatpush.msra.mxu0 %v1492
      %1559 = vmatmul.f32.gmra.mxu0 %v1407
      %v1560 = vpop.f32.mrf.mxu0
      %v1561 = vadd.f32 %v1541, %v1560
      %1562 = vmatmul.f32.gmra.mxu0 %v1408
      %v1563 = vpop.f32.mrf.mxu0
      %v1564 = vadd.f32 %v1541, %v1563
      %1565 = vmatmul.f32.gmra.mxu0 %v1409
      %v1566 = vpop.f32.mrf.mxu0
      %v1567 = vadd.f32 %v1541, %v1566
      %1568 = vmatmul.f32.gmra.mxu0 %v1410
      %v1569 = vpop.f32.mrf.mxu0
      %v1570 = vadd.f32 %v1541, %v1569
      %1571 = vmatmul.f32.gmra.mxu0 %v1411
      %v1572 = vpop.f32.mrf.mxu0
      %v1573 = vadd.f32 %v1541, %v1572
      %1574 = vmatmul.f32.gmra.mxu0 %v1412
      %v1575 = vpop.f32.mrf.mxu0
      %v1576 = vadd.f32 %v1541, %v1575
      %1577 = vmatmul.f32.gmra.mxu0 %v1413
      %v1578 = vpop.f32.mrf.mxu0
      %v1579 = vadd.f32 %v1541, %v1578
      %1580 = vmatmul.f32.gmra.mxu0 %v1414
      %v1581 = vpop.f32.mrf.mxu0
      %v1582 = vadd.f32 %v1541, %v1581
      %1583 = vmatmul.f32.gmra.mxu0 %v1415
      %v1584 = vpop.f32.mrf.mxu0
      %v1585 = vadd.f32 %v1541, %v1584
      %1586 = vmatmul.f32.gmra.mxu0 %v1416
      %v1587 = vpop.f32.mrf.mxu0
      %v1588 = vadd.f32 %v1541, %v1587
      %1589 = vmatmul.f32.gmra.mxu0 %v1417
      %v1590 = vpop.f32.mrf.mxu0
      %v1591 = vadd.f32 %v1541, %v1590
      %1592 = vmatmul.f32.gmra.mxu0 %v1418
      %v1593 = vpop.f32.mrf.mxu0
      %v1594 = vadd.f32 %v1541, %v1593
      %1595 = vmatmul.f32.gmra.mxu0 %v1419
      %v1596 = vpop.f32.mrf.mxu0
      %v1597 = vadd.f32 %v1541, %v1596
      %1598 = vmatmul.f32.gmra.mxu0 %v1420
      %v1599 = vpop.f32.mrf.mxu0
      %v1600 = vadd.f32 %v1541, %v1599
      %1601 = vmatmul.f32.gmra.mxu0 %v1421
      %v1602 = vpop.f32.mrf.mxu0
      %v1603 = vadd.f32 %v1541, %v1602
      %1604 = vmatmul.f32.gmra.mxu0 %v1422
      %v1605 = vpop.f32.mrf.mxu0
      %v1606 = vadd.f32 %v1541, %v1605
      %1607 = vdwg.mxu0
      %v1608 = vmax.f32 %v1561, 0.0
      %v1609 = vmax.f32 %v1564, 0.0
      %v1610 = vmax.f32 %v1567, 0.0
      %v1611 = vmax.f32 %v1570, 0.0
      %v1612 = vmax.f32 %v1573, 0.0
      %v1613 = vmax.f32 %v1576, 0.0
      %v1614 = vmax.f32 %v1579, 0.0
      %v1615 = vmax.f32 %v1582, 0.0
      %v1616 = vmax.f32 %v1585, 0.0
      %v1617 = vmax.f32 %v1588, 0.0
      %v1618 = vmax.f32 %v1591, 0.0
      %v1619 = vmax.f32 %v1594, 0.0
      %v1620 = vmax.f32 %v1597, 0.0
      %v1621 = vmax.f32 %v1600, 0.0
      %v1622 = vmax.f32 %v1603, 0.0
      %v1623 = vmax.f32 %v1606, 0.0
      %v1624 = vld [vmem:[%s6] sm:$0xff]
      %v1625 = vld [vmem:[%s6 + $0x8] sm:$0xff]
      %v1626 = vld [vmem:[%s6 + $0x10] sm:$0xff]
      %v1627 = vld [vmem:[%s6 + $0x18] sm:$0xff]
      %vm1628 = vcmask 261120
      %v1630 = vsel %vm1628, %v1608, 0
      %v1633 = vsel %vm1628, %v1609, 0
      %v1636 = vsel %vm1628, %v1610, 0
      %v1639 = vsel %vm1628, %v1611, 0
      %v1642 = vsel %vm1628, %v1612, 0
      %v1645 = vsel %vm1628, %v1613, 0
      %v1648 = vsel %vm1628, %v1614, 0
      %v1651 = vsel %vm1628, %v1615, 0
      %v1654 = vsel %vm1628, %v1616, 0
      %v1657 = vsel %vm1628, %v1617, 0
      %v1660 = vsel %vm1628, %v1618, 0
      %v1663 = vsel %vm1628, %v1619, 0
      %v1666 = vsel %vm1628, %v1620, 0
      %v1669 = vsel %vm1628, %v1621, 0
      %v1672 = vsel %vm1628, %v1622, 0
      %v1675 = vsel %vm1628, %v1623, 0
      %1677 = vmatpush.msra.mxu0 0.0
      %1678 = vmatpush.msra.mxu0 0.0
      %1679 = vmatpush.msra.mxu0 0.0
      %1680 = vmatpush.msra.mxu0 0.0
      %1681 = vmatpush.msra.mxu0 0.0
      %1682 = vmatpush.msra.mxu0 0.0
      %1683 = vmatpush.msra.mxu0 0.0
      %1684 = vmatpush.msra.mxu0 0.0
      %1685 = vmatpush.msra.mxu0 0.0
      %1686 = vmatpush.msra.mxu0 0.0
      %1687 = vmatpush.msra.mxu0 0.0
      %1688 = vmatpush.msra.mxu0 0.0
      %1689 = vmatpush.msra.mxu0 %v1627
      %1690 = vmatpush.msra.mxu0 %v1626
      %1691 = vmatpush.msra.mxu0 %v1625
      %1692 = vmatpush.msra.mxu0 %v1624
      %1693 = vmatmul.f32.gmra.mxu0 %v1630
      %v1694 = vpop.f32.mrf.mxu0
      %v1695 = vadd.f32 0.0, %v1694
      %1696 = vmatmul.f32.gmra.mxu0 %v1633
      %v1697 = vpop.f32.mrf.mxu0
      %v1698 = vadd.f32 0.0, %v1697
      %1699 = vmatmul.f32.gmra.mxu0 %v1636
      %v1700 = vpop.f32.mrf.mxu0
      %v1701 = vadd.f32 0.0, %v1700
      %1702 = vmatmul.f32.gmra.mxu0 %v1639
      %v1703 = vpop.f32.mrf.mxu0
      %v1704 = vadd.f32 0.0, %v1703
      %1705 = vmatmul.f32.gmra.mxu0 %v1642
      %v1706 = vpop.f32.mrf.mxu0
      %v1707 = vadd.f32 0.0, %v1706
      %1708 = vmatmul.f32.gmra.mxu0 %v1645
      %v1709 = vpop.f32.mrf.mxu0
      %v1710 = vadd.f32 0.0, %v1709
      %1711 = vmatmul.f32.gmra.mxu0 %v1648
      %v1712 = vpop.f32.mrf.mxu0
      %v1713 = vadd.f32 0.0, %v1712
      %1714 = vmatmul.f32.gmra.mxu0 %v1651
      %v1715 = vpop.f32.mrf.mxu0
      %v1716 = vadd.f32 0.0, %v1715
      %1717 = vmatmul.f32.gmra.mxu0 %v1654
      %v1718 = vpop.f32.mrf.mxu0
      %v1719 = vadd.f32 0.0, %v1718
      %1720 = vmatmul.f32.gmra.mxu0 %v1657
      %v1721 = vpop.f32.mrf.mxu0
      %v1722 = vadd.f32 0.0, %v1721
      %1723 = vmatmul.f32.gmra.mxu0 %v1660
      %v1724 = vpop.f32.mrf.mxu0
      %v1725 = vadd.f32 0.0, %v1724
      %1726 = vmatmul.f32.gmra.mxu0 %v1663
      %v1727 = vpop.f32.mrf.mxu0
      %v1728 = vadd.f32 0.0, %v1727
      %1729 = vmatmul.f32.gmra.mxu0 %v1666
      %v1730 = vpop.f32.mrf.mxu0
      %v1731 = vadd.f32 0.0, %v1730
      %1732 = vmatmul.f32.gmra.mxu0 %v1669
      %v1733 = vpop.f32.mrf.mxu0
      %v1734 = vadd.f32 0.0, %v1733
      %1735 = vmatmul.f32.gmra.mxu0 %v1672
      %v1736 = vpop.f32.mrf.mxu0
      %v1737 = vadd.f32 0.0, %v1736
      %1738 = vmatmul.f32.gmra.mxu0 %v1675
      %v1739 = vpop.f32.mrf.mxu0
      %v1740 = vadd.f32 0.0, %v1739
      %1741 = vdwg.mxu0
      %v1742 = vld [vmem:[%s7] sm:$0x1]
      %v1744 = vperm.slane %v1742, 0
      %1746 = vmatpush.msra.mxu0 %v1740
      %1747 = vmatpush.msra.mxu0 %v1737
      %1748 = vmatpush.msra.mxu0 %v1734
      %1749 = vmatpush.msra.mxu0 %v1731
      %1750 = vmatpush.msra.mxu0 %v1728
      %1751 = vmatpush.msra.mxu0 %v1725
      %1752 = vmatpush.msra.mxu0 %v1722
      %1753 = vmatpush.msra.mxu0 %v1719
      %1754 = vmatpush.msra.mxu0 %v1716
      %1755 = vmatpush.msra.mxu0 %v1713
      %1756 = vmatpush.msra.mxu0 %v1710
      %1757 = vmatpush.msra.mxu0 %v1707
      %1758 = vmatpush.msra.mxu0 %v1704
      %1759 = vmatpush.msra.mxu0 %v1701
      %1760 = vmatpush.msra.mxu0 %v1698
      %1761 = vmatpush.msra.mxu0 %v1695
      %1762 = vmatmul.f32.gmra.mxu0 %v1407
      %v1763 = vpop.f32.mrf.mxu0
      %v1764 = vadd.f32 %v1744, %v1763
      %1765 = vmatmul.f32.gmra.mxu0 %v1408
      %v1766 = vpop.f32.mrf.mxu0
      %v1767 = vadd.f32 %v1744, %v1766
      %1768 = vmatmul.f32.gmra.mxu0 %v1409
      %v1769 = vpop.f32.mrf.mxu0
      %v1770 = vadd.f32 %v1744, %v1769
      %1771 = vmatmul.f32.gmra.mxu0 %v1410
      %v1772 = vpop.f32.mrf.mxu0
      %v1773 = vadd.f32 %v1744, %v1772
      %1774 = vmatmul.f32.gmra.mxu0 %v1411
      %v1775 = vpop.f32.mrf.mxu0
      %v1776 = vadd.f32 %v1744, %v1775
      %1777 = vmatmul.f32.gmra.mxu0 %v1412
      %v1778 = vpop.f32.mrf.mxu0
      %v1779 = vadd.f32 %v1744, %v1778
      %1780 = vmatmul.f32.gmra.mxu0 %v1413
      %v1781 = vpop.f32.mrf.mxu0
      %v1782 = vadd.f32 %v1744, %v1781
      %1783 = vmatmul.f32.gmra.mxu0 %v1414
      %v1784 = vpop.f32.mrf.mxu0
      %v1785 = vadd.f32 %v1744, %v1784
      %1786 = vmatmul.f32.gmra.mxu0 %v1415
      %v1787 = vpop.f32.mrf.mxu0
      %v1788 = vadd.f32 %v1744, %v1787
      %1789 = vmatmul.f32.gmra.mxu0 %v1416
      %v1790 = vpop.f32.mrf.mxu0
      %v1791 = vadd.f32 %v1744, %v1790
      %1792 = vmatmul.f32.gmra.mxu0 %v1417
      %v1793 = vpop.f32.mrf.mxu0
      %v1794 = vadd.f32 %v1744, %v1793
      %1795 = vmatmul.f32.gmra.mxu0 %v1418
      %v1796 = vpop.f32.mrf.mxu0
      %v1797 = vadd.f32 %v1744, %v1796
      %1798 = vmatmul.f32.gmra.mxu0 %v1419
      %v1799 = vpop.f32.mrf.mxu0
      %v1800 = vadd.f32 %v1744, %v1799
      %1801 = vmatmul.f32.gmra.mxu0 %v1420
      %v1802 = vpop.f32.mrf.mxu0
      %v1803 = vadd.f32 %v1744, %v1802
      %1804 = vmatmul.f32.gmra.mxu0 %v1421
      %v1805 = vpop.f32.mrf.mxu0
      %v1806 = vadd.f32 %v1744, %v1805
      %1807 = vmatmul.f32.gmra.mxu0 %v1422
      %v1808 = vpop.f32.mrf.mxu0
      %v1809 = vadd.f32 %v1744, %v1808
      %1810 = vdwg.mxu0
      %1811 = vst.msk [vmem:[%s356] sm:$0xff] %vm1425, %v1764
      %1812 = vst.msk [vmem:[%s356 + $0x8] sm:$0xff] %vm1425, %v1767
      %1813 = vst.msk [vmem:[%s356 + $0x10] sm:$0xff] %vm1425, %v1770
      %1814 = vst.msk [vmem:[%s356 + $0x18] sm:$0xff] %vm1425, %v1773
      %1815 = vst.msk [vmem:[%s356 + $0x20] sm:$0xff] %vm1425, %v1776
      %1816 = vst.msk [vmem:[%s356 + $0x28] sm:$0xff] %vm1425, %v1779
      %1817 = vst.msk [vmem:[%s356 + $0x30] sm:$0xff] %vm1425, %v1782
      %1818 = vst.msk [vmem:[%s356 + $0x38] sm:$0xff] %vm1425, %v1785
      %1819 = vst.msk [vmem:[%s356 + $0x40] sm:$0xff] %vm1425, %v1788
      %1820 = vst.msk [vmem:[%s356 + $0x48] sm:$0xff] %vm1425, %v1791
      %1821 = vst.msk [vmem:[%s356 + $0x50] sm:$0xff] %vm1425, %v1794
      %1822 = vst.msk [vmem:[%s356 + $0x58] sm:$0xff] %vm1425, %v1797
      %1823 = vst.msk [vmem:[%s356 + $0x60] sm:$0xff] %vm1425, %v1800
      %1824 = vst.msk [vmem:[%s356 + $0x68] sm:$0xff] %vm1425, %v1803
      %1825 = vst.msk [vmem:[%s356 + $0x70] sm:$0xff] %vm1425, %v1806
      %1826 = vst.msk [vmem:[%s356 + $0x78] sm:$0xff] %vm1425, %v1809
      %p1827 = scmp.lt.s32.totalorder %s19, 3
      %s1828 = scalar_select %p1827, %s19, 3
      %s1829 = smul.addr %s1828, 16
      %s1830 = smul.addr %s1829, 8
      %s1831 = scalar_lea.vmem %s8, %s1830
      // Predicated region
      $region53: #{gae_forward.1} parent=51 // pred_check
        %p1832 = pneg %p225
      $region54: #{gae_forward.1} parent=51 // pred_check_branch
        %1834 = sbr.rel (%p1832) target = $region56
      $region55: #{gae_forward.1} parent=51 // pred_region
        _
      $region56: #{gae_forward.1} parent=51 // pred_fallthru
        _
    $region52: #{gae_forward.1} parent=5 // pred_fallthru
      _
    %p1835 = scmp.le.s32.totalorder 2, %s14
    // Predicated region
    $region57: #{gae_forward.1} parent=5 // pred_check
      %p1836 = pneg %p1835
    $region58: #{gae_forward.1} parent=5 // pred_check_branch
      %1838 = sbr.rel (%p1836) target = $region60
    $region59: #{gae_forward.1} parent=5 // pred_region
      %s1839 = ssub.s32 %s14, 2
      // Predicated region
      $region61: #{gae_forward.1} parent=59 // pred_check
        %p1840 = pneg %p231
      $region62: #{gae_forward.1} parent=59 // pred_check_branch
        %1842 = sbr.rel (%p1840) target = $region64
      $region63: #{gae_forward.1} parent=59 // pred_region
        %p1843 = scmp.lt.s32.totalorder %s20, 3
        %s1844 = scalar_select %p1843, %s20, 3
        %s1845 = smul.addr %s1844, 16
        %s1846 = smul.addr %s1845, 8
        %s1847 = scalar_lea.vmem %s8, %s1846
      $region64: #{gae_forward.1} parent=59 // pred_fallthru
        _
    $region60: #{gae_forward.1} parent=5 // pred_fallthru
      _
  $region6: #{gae_forward.1} parent=0 // loop_footer
    %s18 = sadd.s32 1, %s14
  $region7: #{gae_forward.1} parent=0 // loop_footer_branch
    %13 = sbr.rel target = $region3
  $region8: #{gae_forward.1} parent=0 // loop_exit
    _

</llo_original>
